<compile_context>
chip_gen: v7x
topology: tpu7x:2x2x1
jax: 0.10.0
libtpu: 0.0.40
codegen_flags: <defaults>
</compile_context>

<pallas_src>
import jax
import jax.numpy as jnp
from jax.experimental import pallas as pl
from jax.experimental.pallas import tpu as pltpu


def attention_kernel(x_ref, w1_ref, b1_ref, w2_ref, b2_ref, o_ref):
    bt, n, s1 = x_ref.shape
    x = x_ref[...]                                     # [BT, N, S1]  (f32)

    # Fold the batch tile into the matmul M dimension so the MXU sees BT*N rows.
    # NOTE: this is a free relayout because N == 8 (one sublane group); if N ever
    # becomes a non-multiple of 8 this reshape would materialize a VMEM relayout.
    x2 = x.reshape(bt * n, s1)                         # [BT*N, S1]

    # Layer 1: Linear + ReLU (MXU matmul, f32 accumulation).
    h = jnp.dot(x2, w1_ref[...], preferred_element_type=jnp.float32) + b1_ref[...]
    h = jnp.maximum(h, 0.0)                            # [BT*N, S2]

    # Layer 2: Linear.
    s = jnp.dot(h, w2_ref[...], preferred_element_type=jnp.float32) + b2_ref[...]
    s3 = s.reshape(bt, n, s1)                          # [BT, N, S1]

    # Softmax across capsules (the N axis) per instance — numerically stable.
    m = jnp.max(s3, axis=1, keepdims=True)             # [BT, 1, S1]
    e = jnp.exp(s3 - m)                                # [BT, N, S1]
    denom = jnp.sum(e, axis=1, keepdims=True)          # [BT, 1, S1]
    attn = e * pl.reciprocal(denom, approx=True)       # EUP vrcp — frees VALU slots

    # Attention-weighted input.
    o_ref[...] = (x * attn).astype(o_ref.dtype)


def reference_attention(x, w1, b1, w2, b2):
    """Pure-JAX reference mirroring the PyTorch forward (softmax over the capsule dim)."""
    h = jax.nn.relu(x @ w1 + b1)
    s = h @ w2 + b2
    attn = jax.nn.softmax(s, axis=-2)                  # dim 0 of each instance
    return x * attn


def _num_tensorcores():
    """1 grid step on single-TC chips (v5e/v6e), 2 on dual-TC chips (v7x)."""
    try:
        kind = jax.devices()[0].device_kind.lower()
        if "v7" in kind:
            return 2
    except Exception:
        pass
    return 1


def capsgnn_attention(x, w1, b1, w2, b2, *, block_b=None):
    """CapsGNN Attention forward.

    x  : [N, S1] (single instance, as in the PyTorch module) or [B, N, S1] (batched).
    w1 : [S1, S2]   b1 : [1, S2] (or [S2])
    w2 : [S2, S1]   b2 : [1, S1] (or [S1])
    Returns an array of the same shape as x.
    """
    squeeze = x.ndim == 2
    if squeeze:
        x = x[None]                                    # -> [1, N, S1]

    B, N, S1 = x.shape
    S2 = w1.shape[1]
    b1 = b1.reshape(1, S2)
    b2 = b2.reshape(1, S1)

    # Tiny-batch fallback: an [<8, N, S1] problem is below the pallas_call
    # overhead floor — plain XLA is strictly faster.
    if B < 8:
        out = reference_attention(x, w1, b1, w2, b2)
        return out[0] if squeeze else out

    if block_b is None:
        steps = min(_num_tensorcores(), B)
        block_b = -(-B // steps)                       # ceil(B / steps)
    steps = -(-B // block_b)
    Bp = steps * block_b

    xp = x if Bp == B else jnp.pad(x, ((0, Bp - B), (0, 0), (0, 0)))

    out = pl.pallas_call(
        attention_kernel,
        out_shape=jax.ShapeDtypeStruct((Bp, N, S1), x.dtype),
        grid=(steps,),
        in_specs=[
            pl.BlockSpec((block_b, N, S1), lambda b: (b, 0, 0)),   # x tile (streams)
            pl.BlockSpec((S1, S2), lambda b: (0, 0)),              # W1 (VMEM-resident)
            pl.BlockSpec((1, S2), lambda b: (0, 0)),               # b1
            pl.BlockSpec((S2, S1), lambda b: (0, 0)),              # W2
            pl.BlockSpec((1, S1), lambda b: (0, 0)),               # b2
        ],
        out_specs=pl.BlockSpec((block_b, N, S1), lambda b: (b, 0, 0)),
        compiler_params=pltpu.CompilerParams(
            dimension_semantics=("parallel",),                     # dual-TC split on v7x
        ),
    )(xp, w1, b1, w2, b2)

    if Bp != B:
        out = out[:B]
    return out[0] if squeeze else out


if __name__ == "__main__":
    # Shapes consistent with the module:
    #   attention_size_1 = 32 (input / output feature dim)
    #   attention_size_2 = 16 (hidden attention dim)
    #   N = 8 capsule rows per instance, B = 64 independent instances (graphs)
    B, N, S1, S2 = 64, 8, 32, 16
    key = jax.random.PRNGKey(0)
    kx, kw1, kb1, kw2, kb2 = jax.random.split(key, 5)

    x = jax.random.normal(kx, (B, N, S1), dtype=jnp.float32)
    # Deterministic "Linear" parameters (uniform like torch default, scaled by 1/sqrt(fan_in)).
    w1 = jax.random.uniform(kw1, (S1, S2), jnp.float32, -1.0, 1.0) / jnp.sqrt(S1)
    b1 = jax.random.uniform(kb1, (1, S2), jnp.float32, -1.0, 1.0) / jnp.sqrt(S1)
    w2 = jax.random.uniform(kw2, (S2, S1), jnp.float32, -1.0, 1.0) / jnp.sqrt(S2)
    b2 = jax.random.uniform(kb2, (1, S1), jnp.float32, -1.0, 1.0) / jnp.sqrt(S2)

    # Batched path (B instances in one pallas_call, 1-2 grid steps).
    out = jax.block_until_ready(capsgnn_attention(x, w1, b1, w2, b2))
    ref = reference_attention(x, w1, b1, w2, b2)
    assert out.shape == (B, N, S1)
    assert jnp.allclose(out, ref, atol=2e-3, rtol=2e-3), "batched mismatch vs reference"

    # Single-instance path (exact PyTorch module signature: x_in is [N, S1]).
    # Falls back to plain XLA (below the pallas_call overhead floor).
    x1 = x[0]
    out1 = jax.block_until_ready(capsgnn_attention(x1, w1, b1, w2, b2))
    ref1 = reference_attention(x1, w1, b1, w2, b2)
    assert out1.shape == (N, S1)
    assert jnp.allclose(out1, ref1, atol=2e-3, rtol=2e-3), "single-instance mismatch vs reference"

    print("KERNEL_OK")
</pallas_src>

<mosaic_0001>
module attributes {stable_mosaic.version = 11 : i64} {
  func.func @attention_kernel(%arg0: i32, %arg1: memref<64x8x32xf32, #tpu.memory_space<vmem>>, %arg2: memref<32x16xf32, #tpu.memory_space<vmem>>, %arg3: memref<1x16xf32, #tpu.memory_space<vmem>>, %arg4: memref<16x32xf32, #tpu.memory_space<vmem>>, %arg5: memref<1x32xf32, #tpu.memory_space<vmem>>, %arg6: memref<64x8x32xf32, #tpu.memory_space<vmem>>) attributes {dimension_semantics = [#tpu.dimension_semantics<parallel>], iteration_bounds = array<i64: 1>, scalar_prefetch = 0 : i64, scratch_operands = 0 : i64, tpu.core_type = #tpu.core_type<tc>, window_params = [{transform_indices = @transform_0, window_bounds = array<i64: 64, 8, 32>}, {pipeline_mode = #tpu.pipeline_mode<synchronous>, transform_indices = @transform_1, window_bounds = array<i64: 32, 16>}, {pipeline_mode = #tpu.pipeline_mode<synchronous>, transform_indices = @transform_2, window_bounds = array<i64: 1, 16>}, {pipeline_mode = #tpu.pipeline_mode<synchronous>, transform_indices = @transform_3, window_bounds = array<i64: 16, 32>}, {pipeline_mode = #tpu.pipeline_mode<synchronous>, transform_indices = @transform_4, window_bounds = array<i64: 1, 32>}, {transform_indices = @transform_5, window_bounds = array<i64: 64, 8, 32>}]} {
    %c0 = arith.constant 0 : index
    %c0_0 = arith.constant 0 : index
    %c0_1 = arith.constant 0 : index
    %0 = vector.load %arg1[%c0, %c0_0, %c0_1] : memref<64x8x32xf32, #tpu.memory_space<vmem>>, vector<64x8x32xf32>
    %1 = vector.shape_cast %0 : vector<64x8x32xf32> to vector<512x32xf32>
    %c0_2 = arith.constant 0 : index
    %c0_3 = arith.constant 0 : index
    %2 = vector.load %arg2[%c0_2, %c0_3] : memref<32x16xf32, #tpu.memory_space<vmem>>, vector<32x16xf32>
    %cst = arith.constant dense<0.000000e+00> : vector<512x16xf32>
    %3 = tpu.matmul %1, %2, %cst {dimension_numbers = #tpu.dot_dimension_numbers<[1], [0], [0], [1], [0, 0, 1, 1], [], []>} : vector<512x32xf32>, vector<32x16xf32>, vector<512x16xf32> -> vector<512x16xf32>
    %c0_4 = arith.constant 0 : index
    %c0_5 = arith.constant 0 : index
    %4 = vector.load %arg3[%c0_4, %c0_5] : memref<1x16xf32, #tpu.memory_space<vmem>>, vector<1x16xf32>
    %5 = vector.broadcast %4 : vector<1x16xf32> to vector<512x16xf32>
    %6 = arith.addf %3, %5 : vector<512x16xf32>
    %cst_6 = arith.constant 0.000000e+00 : f32
    %7 = vector.broadcast %cst_6 : f32 to vector<512x16xf32>
    %8 = arith.maximumf %6, %7 : vector<512x16xf32>
    %c0_7 = arith.constant 0 : index
    %c0_8 = arith.constant 0 : index
    %9 = vector.load %arg4[%c0_7, %c0_8] : memref<16x32xf32, #tpu.memory_space<vmem>>, vector<16x32xf32>
    %cst_9 = arith.constant dense<0.000000e+00> : vector<512x32xf32>
    %10 = tpu.matmul %8, %9, %cst_9 {dimension_numbers = #tpu.dot_dimension_numbers<[1], [0], [0], [1], [0, 0, 1, 1], [], []>} : vector<512x16xf32>, vector<16x32xf32>, vector<512x32xf32> -> vector<512x32xf32>
    %c0_10 = arith.constant 0 : index
    %c0_11 = arith.constant 0 : index
    %11 = vector.load %arg5[%c0_10, %c0_11] : memref<1x32xf32, #tpu.memory_space<vmem>>, vector<1x32xf32>
    %12 = vector.broadcast %11 : vector<1x32xf32> to vector<512x32xf32>
    %13 = arith.addf %10, %12 : vector<512x32xf32>
    %14 = vector.shape_cast %13 : vector<512x32xf32> to vector<64x8x32xf32>
    %cst_12 = arith.constant dense<0xFF800000> : vector<64x32xf32>
    %15 = vector.multi_reduction <maximumf>, %14, %cst_12 [1] : vector<64x8x32xf32> to vector<64x32xf32>
    %16 = vector.shape_cast %15 : vector<64x32xf32> to vector<64x1x32xf32>
    %17 = vector.broadcast %16 : vector<64x1x32xf32> to vector<64x8x32xf32>
    %18 = arith.subf %14, %17 : vector<64x8x32xf32>
    %19 = math.exp %18 : vector<64x8x32xf32>
    %cst_13 = arith.constant dense<0.000000e+00> : vector<64x32xf32>
    %20 = vector.multi_reduction <add>, %19, %cst_13 [1] : vector<64x8x32xf32> to vector<64x32xf32>
    %21 = vector.shape_cast %20 : vector<64x32xf32> to vector<64x1x32xf32>
    %22 = tpu.reciprocal %21 {approx = true} : vector<64x1x32xf32> -> vector<64x1x32xf32>
    %23 = vector.broadcast %22 : vector<64x1x32xf32> to vector<64x8x32xf32>
    %24 = arith.mulf %19, %23 : vector<64x8x32xf32>
    %25 = arith.mulf %0, %24 : vector<64x8x32xf32>
    %c0_14 = arith.constant 0 : index
    %c0_15 = arith.constant 0 : index
    %c0_16 = arith.constant 0 : index
    %26 = vector.load %arg6[%c0_14, %c0_15, %c0_16] : memref<64x8x32xf32, #tpu.memory_space<vmem>>, vector<64x8x32xf32>
    tpu.vector_store %arg6[%c0_14, %c0_15, %c0_16], %25 {strides = array<i32>} : memref<64x8x32xf32, #tpu.memory_space<vmem>>, vector<64x8x32xf32>,
    return
  }
  func.func @transform_0(%arg0: i32) -> (i32, i32, i32) {
    %c0_i32 = arith.constant 0 : i32
    %c0_i32_0 = arith.constant 0 : i32
    %c0_i32_1 = arith.constant 0 : i32
    return %arg0, %c0_i32, %c0_i32_0 : i32, i32, i32
  }
  func.func @transform_1(%arg0: i32) -> (i32, i32) {
    %c0_i32 = arith.constant 0 : i32
    %c0_i32_0 = arith.constant 0 : i32
    %c0_i32_1 = arith.constant 0 : i32
    return %c0_i32, %c0_i32_0 : i32, i32
  }
  func.func @transform_2(%arg0: i32) -> (i32, i32) {
    %c0_i32 = arith.constant 0 : i32
    %c0_i32_0 = arith.constant 0 : i32
    %c0_i32_1 = arith.constant 0 : i32
    return %c0_i32, %c0_i32_0 : i32, i32
  }
  func.func @transform_3(%arg0: i32) -> (i32, i32) {
    %c0_i32 = arith.constant 0 : i32
    %c0_i32_0 = arith.constant 0 : i32
    %c0_i32_1 = arith.constant 0 : i32
    return %c0_i32, %c0_i32_0 : i32, i32
  }
  func.func @transform_4(%arg0: i32) -> (i32, i32) {
    %c0_i32 = arith.constant 0 : i32
    %c0_i32_0 = arith.constant 0 : i32
    %c0_i32_1 = arith.constant 0 : i32
    return %c0_i32, %c0_i32_0 : i32, i32
  }
  func.func @transform_5(%arg0: i32) -> (i32, i32, i32) {
    %c0_i32 = arith.constant 0 : i32
    %c0_i32_0 = arith.constant 0 : i32
    %c0_i32_1 = arith.constant 0 : i32
    return %arg0, %c0_i32, %c0_i32_0 : i32, i32, i32
  }
}

</mosaic_0001>

<llo_original>
// kernel: tpu_custom_call.1
$region0: #{tpu_custom_call.1}
  #allocation0 [shape = 'u32[]', space=smem, size = 0x4, offset = 0x4, fixed_abs, tag = 'smem constant byte address 0x4 - core index']
  #allocation1 [shape = 'u32[144,128]{1,0:T(1,128)}', space=vmem, size = 0x12000, scoped, tag = 'internal scratch']
  %s0 = inlined_call_operand.vmem [shape: f32[64,8,32], index: 0, kind: input, shape index: {}]
  %s1 = inlined_call_operand.vmem [shape: f32[32,16], index: 1, kind: input, shape index: {}]
  %s2 = inlined_call_operand.vmem [shape: f32[1,16], index: 2, kind: input, shape index: {}]
  %s3 = inlined_call_operand.vmem [shape: f32[16,32], index: 3, kind: input, shape index: {}]
  %s4 = inlined_call_operand.vmem [shape: f32[1,32], index: 4, kind: input, shape index: {}]
  %s5 = inlined_call_operand.vmem [shape: f32[64,8,32], index: 5, kind: output, shape index: {}]
  %s6 = sld [smem:[#allocation0]]
  $region30: #{tpu_custom_call.1} parent=0
    _
  %s8 = ssub.s32 1, %s6
  %s9 = scalar_select 0, %s8, %s6
  // Predicated region
  $region2: #{tpu_custom_call.1} parent=0 // pred_check
    _
  $region3: #{tpu_custom_call.1} parent=0 // pred_check_branch
    %11 = sbr.rel (0) target = $region5
  $region4: #{tpu_custom_call.1} parent=0 // pred_region
    _
  $region5: #{tpu_custom_call.1} parent=0 // pred_fallthru
    _
  // Predicated region
  $region6: #{tpu_custom_call.1} parent=0 // pred_check
    _
  $region7: #{tpu_custom_call.1} parent=0 // pred_check_branch
    %13 = sbr.rel (0) target = $region9
  $region8: #{tpu_custom_call.1} parent=0 // pred_region
    _
  $region9: #{tpu_custom_call.1} parent=0 // pred_fallthru
    _
  // Predicated region
  $region10: #{tpu_custom_call.1} parent=0 // pred_check
    _
  $region11: #{tpu_custom_call.1} parent=0 // pred_check_branch
    %15 = sbr.rel (0) target = $region13
  $region12: #{tpu_custom_call.1} parent=0 // pred_region
    _
  $region13: #{tpu_custom_call.1} parent=0 // pred_fallthru
    _
  // Predicated region
  $region14: #{tpu_custom_call.1} parent=0 // pred_check
    _
  $region15: #{tpu_custom_call.1} parent=0 // pred_check_branch
    %17 = sbr.rel (0) target = $region17
  $region16: #{tpu_custom_call.1} parent=0 // pred_region
    _
  $region17: #{tpu_custom_call.1} parent=0 // pred_fallthru
    _
  // Predicated region
  $region18: #{tpu_custom_call.1} parent=0 // pred_check
    _
  $region19: #{tpu_custom_call.1} parent=0 // pred_check_branch
    %19 = sbr.rel (0) target = $region21
  $region20: #{tpu_custom_call.1} parent=0 // pred_region
    _
  $region21: #{tpu_custom_call.1} parent=0 // pred_fallthru
    _
  %v20 = vld [vmem:[%s0] sm:$0xff]
  %v21 = vld [vmem:[%s0 + $0x8] sm:$0xff]
  %v22 = vld [vmem:[%s0 + $0x10] sm:$0xff]
  %v23 = vld [vmem:[%s0 + $0x18] sm:$0xff]
  %v24 = vld [vmem:[%s0 + $0x20] sm:$0xff]
  %v25 = vld [vmem:[%s0 + $0x28] sm:$0xff]
  %v26 = vld [vmem:[%s0 + $0x30] sm:$0xff]
  %v27 = vld [vmem:[%s0 + $0x38] sm:$0xff]
  %v28 = vld [vmem:[%s0 + $0x40] sm:$0xff]
  %v29 = vld [vmem:[%s0 + $0x48] sm:$0xff]
  %v30 = vld [vmem:[%s0 + $0x50] sm:$0xff]
  %v31 = vld [vmem:[%s0 + $0x58] sm:$0xff]
  %v32 = vld [vmem:[%s0 + $0x60] sm:$0xff]
  %v33 = vld [vmem:[%s0 + $0x68] sm:$0xff]
  %v34 = vld [vmem:[%s0 + $0x70] sm:$0xff]
  %v35 = vld [vmem:[%s0 + $0x78] sm:$0xff]
  %v36 = vld [vmem:[%s0 + $0x80] sm:$0xff]
  %v37 = vld [vmem:[%s0 + $0x88] sm:$0xff]
  %v38 = vld [vmem:[%s0 + $0x90] sm:$0xff]
  %v39 = vld [vmem:[%s0 + $0x98] sm:$0xff]
  %v40 = vld [vmem:[%s0 + $0xa0] sm:$0xff]
  %v41 = vld [vmem:[%s0 + $0xa8] sm:$0xff]
  %v42 = vld [vmem:[%s0 + $0xb0] sm:$0xff]
  %v43 = vld [vmem:[%s0 + $0xb8] sm:$0xff]
  %v44 = vld [vmem:[%s0 + $0xc0] sm:$0xff]
  %v45 = vld [vmem:[%s0 + $0xc8] sm:$0xff]
  %v46 = vld [vmem:[%s0 + $0xd0] sm:$0xff]
  %v47 = vld [vmem:[%s0 + $0xd8] sm:$0xff]
  %v48 = vld [vmem:[%s0 + $0xe0] sm:$0xff]
  %v49 = vld [vmem:[%s0 + $0xe8] sm:$0xff]
  %v50 = vld [vmem:[%s0 + $0xf0] sm:$0xff]
  %v51 = vld [vmem:[%s0 + $0xf8] sm:$0xff]
  %v52 = vld [vmem:[%s0 + $0x100] sm:$0xff]
  %v53 = vld [vmem:[%s0 + $0x108] sm:$0xff]
  %v54 = vld [vmem:[%s0 + $0x110] sm:$0xff]
  %v55 = vld [vmem:[%s0 + $0x118] sm:$0xff]
  %v56 = vld [vmem:[%s0 + $0x120] sm:$0xff]
  %v57 = vld [vmem:[%s0 + $0x128] sm:$0xff]
  %v58 = vld [vmem:[%s0 + $0x130] sm:$0xff]
  %v59 = vld [vmem:[%s0 + $0x138] sm:$0xff]
  %v60 = vld [vmem:[%s0 + $0x140] sm:$0xff]
  %v61 = vld [vmem:[%s0 + $0x148] sm:$0xff]
  %v62 = vld [vmem:[%s0 + $0x150] sm:$0xff]
  %v63 = vld [vmem:[%s0 + $0x158] sm:$0xff]
  %v64 = vld [vmem:[%s0 + $0x160] sm:$0xff]
  %v65 = vld [vmem:[%s0 + $0x168] sm:$0xff]
  %v66 = vld [vmem:[%s0 + $0x170] sm:$0xff]
  %v67 = vld [vmem:[%s0 + $0x178] sm:$0xff]
  %v68 = vld [vmem:[%s0 + $0x180] sm:$0xff]
  %v69 = vld [vmem:[%s0 + $0x188] sm:$0xff]
  %v70 = vld [vmem:[%s0 + $0x190] sm:$0xff]
  %v71 = vld [vmem:[%s0 + $0x198] sm:$0xff]
  %v72 = vld [vmem:[%s0 + $0x1a0] sm:$0xff]
  %v73 = vld [vmem:[%s0 + $0x1a8] sm:$0xff]
  %v74 = vld [vmem:[%s0 + $0x1b0] sm:$0xff]
  %v75 = vld [vmem:[%s0 + $0x1b8] sm:$0xff]
  %v76 = vld [vmem:[%s0 + $0x1c0] sm:$0xff]
  %v77 = vld [vmem:[%s0 + $0x1c8] sm:$0xff]
  %v78 = vld [vmem:[%s0 + $0x1d0] sm:$0xff]
  %v79 = vld [vmem:[%s0 + $0x1d8] sm:$0xff]
  %v80 = vld [vmem:[%s0 + $0x1e0] sm:$0xff]
  %v81 = vld [vmem:[%s0 + $0x1e8] sm:$0xff]
  %v82 = vld [vmem:[%s0 + $0x1f0] sm:$0xff]
  %v83 = vld [vmem:[%s0 + $0x1f8] sm:$0xff]
  %v84 = vld [vmem:[%s1] sm:$0xff]
  %v85 = vld [vmem:[%s1 + $0x8] sm:$0xff]
  %v86 = vld [vmem:[%s1 + $0x10] sm:$0xff]
  %v87 = vld [vmem:[%s1 + $0x18] sm:$0xff]
  %v88 = vld [vmem:[%s2] sm:$0x1]
  %v90 = vlaneseq
  %v91 = vshrl.u32 %v90, 7
  %v92 = vsub.s32 0, %v91
  %v93 = vrot.slane %v88, %v92
  %vm95 = vcmask 261120
  %v97 = vsel %vm95, %v20, 0
  %v100 = vsel %vm95, %v21, 0
  %v103 = vsel %vm95, %v22, 0
  %v106 = vsel %vm95, %v23, 0
  %v109 = vsel %vm95, %v24, 0
  %v112 = vsel %vm95, %v25, 0
  %v115 = vsel %vm95, %v26, 0
  %v118 = vsel %vm95, %v27, 0
  %v121 = vsel %vm95, %v28, 0
  %v124 = vsel %vm95, %v29, 0
  %v127 = vsel %vm95, %v30, 0
  %v130 = vsel %vm95, %v31, 0
  %v133 = vsel %vm95, %v32, 0
  %v136 = vsel %vm95, %v33, 0
  %v139 = vsel %vm95, %v34, 0
  %v142 = vsel %vm95, %v35, 0
  %v145 = vsel %vm95, %v36, 0
  %v148 = vsel %vm95, %v37, 0
  %v151 = vsel %vm95, %v38, 0
  %v154 = vsel %vm95, %v39, 0
  %v157 = vsel %vm95, %v40, 0
  %v160 = vsel %vm95, %v41, 0
  %v163 = vsel %vm95, %v42, 0
  %v166 = vsel %vm95, %v43, 0
  %v169 = vsel %vm95, %v44, 0
  %v172 = vsel %vm95, %v45, 0
  %v175 = vsel %vm95, %v46, 0
  %v178 = vsel %vm95, %v47, 0
  %v181 = vsel %vm95, %v48, 0
  %v184 = vsel %vm95, %v49, 0
  %v187 = vsel %vm95, %v50, 0
  %v190 = vsel %vm95, %v51, 0
  %v193 = vsel %vm95, %v52, 0
  %v196 = vsel %vm95, %v53, 0
  %v199 = vsel %vm95, %v54, 0
  %v202 = vsel %vm95, %v55, 0
  %v205 = vsel %vm95, %v56, 0
  %v208 = vsel %vm95, %v57, 0
  %v211 = vsel %vm95, %v58, 0
  %v214 = vsel %vm95, %v59, 0
  %v217 = vsel %vm95, %v60, 0
  %v220 = vsel %vm95, %v61, 0
  %v223 = vsel %vm95, %v62, 0
  %v226 = vsel %vm95, %v63, 0
  %v229 = vsel %vm95, %v64, 0
  %v232 = vsel %vm95, %v65, 0
  %v235 = vsel %vm95, %v66, 0
  %v238 = vsel %vm95, %v67, 0
  %v241 = vsel %vm95, %v68, 0
  %v244 = vsel %vm95, %v69, 0
  %v247 = vsel %vm95, %v70, 0
  %v250 = vsel %vm95, %v71, 0
  %v253 = vsel %vm95, %v72, 0
  %v256 = vsel %vm95, %v73, 0
  %v259 = vsel %vm95, %v74, 0
  %v262 = vsel %vm95, %v75, 0
  %v265 = vsel %vm95, %v76, 0
  %v268 = vsel %vm95, %v77, 0
  %v271 = vsel %vm95, %v78, 0
  %v274 = vsel %vm95, %v79, 0
  %v277 = vsel %vm95, %v80, 0
  %v280 = vsel %vm95, %v81, 0
  %v283 = vsel %vm95, %v82, 0
  %v286 = vsel %vm95, %v83, 0
  %288 = vmatprep.subr.mxu0 0.0
  %289 = vmatpush1.msra.mxu0 %v84
  %290 = vmatprep.subr.mxu0 0.0
  %291 = vmatpush1.msra.mxu0 %v85
  %292 = vmatprep.subr.mxu0 0.0
  %293 = vmatpush1.msra.mxu0 %v86
  %294 = vmatprep.subr.mxu0 0.0
  %295 = vmatpush1.msra.mxu0 %v87
  %296 = vmatprep.subr.mxu0 0.0
  %297 = vmatpush1.msra.mxu0 0.0
  %298 = vmatprep.subr.mxu0 0.0
  %299 = vmatpush1.msra.mxu0 0.0
  %300 = vmatprep.subr.mxu0 0.0
  %301 = vmatpush1.msra.mxu0 0.0
  %302 = vmatprep.subr.mxu0 0.0
  %303 = vmatpush1.msra.mxu0 0.0
  %304 = vmatprep.subr.mxu0 0.0
  %305 = vmatpush1.msra.mxu0 0.0
  %306 = vmatprep.subr.mxu0 0.0
  %307 = vmatpush1.msra.mxu0 0.0
  %308 = vmatprep.subr.mxu0 0.0
  %309 = vmatpush1.msra.mxu0 0.0
  %310 = vmatprep.subr.mxu0 0.0
  %311 = vmatpush1.msra.mxu0 0.0
  %312 = vmatprep.subr.mxu0 0.0
  %313 = vmatpush1.msra.mxu0 0.0
  %314 = vmatprep.subr.mxu0 0.0
  %315 = vmatpush1.msra.mxu0 0.0
  %316 = vmatprep.subr.mxu0 0.0
  %317 = vmatpush1.msra.mxu0 0.0
  %318 = vmatprep.subr.mxu0 0.0
  %319 = vmatpush1.msra.mxu0 0.0
  %320 = vmatprep.subr.mxu0 0.0
  %321 = vmatpush1.msra.mxu0 0.0
  %322 = vmatprep.subr.mxu0 0.0
  %323 = vmatpush1.msra.mxu0 0.0
  %324 = vmatprep.subr.mxu0 0.0
  %325 = vmatpush1.msra.mxu0 0.0
  %326 = vmatprep.subr.mxu0 0.0
  %327 = vmatpush1.msra.mxu0 0.0
  %328 = vmatprep.subr.mxu0 0.0
  %329 = vmatpush1.msra.mxu0 0.0
  %330 = vmatprep.subr.mxu0 0.0
  %331 = vmatpush1.msra.mxu0 0.0
  %332 = vmatprep.subr.mxu0 0.0
  %333 = vmatpush1.msra.mxu0 0.0
  %334 = vmatprep.subr.mxu0 0.0
  %335 = vmatpush1.msra.mxu0 0.0
  %336 = vmatprep.subr.mxu0 0.0
  %337 = vmatpush1.msra.mxu0 0.0
  %338 = vmatprep.subr.mxu0 0.0
  %339 = vmatpush1.msra.mxu0 0.0
  %340 = vmatprep.subr.mxu0 0.0
  %341 = vmatpush1.msra.mxu0 0.0
  %342 = vmatprep.subr.mxu0 0.0
  %343 = vmatpush1.msra.mxu0 0.0
  %344 = vmatprep.subr.mxu0 0.0
  %345 = vmatpush1.msra.mxu0 0.0
  %346 = vmatprep.subr.mxu0 0.0
  %347 = vmatpush1.msra.mxu0 0.0
  %348 = vmatprep.subr.mxu0 0.0
  %349 = vmatpush1.msra.mxu0 0.0
  %350 = vmatprep.subr.mxu0 0.0
  %351 = vmatpush1.msra.mxu0 0.0
  %352 = vmatprep.mubr.f32.mxu0 0.0
  %353 = vmatmul.mubr.f32.gmra.mrb[0].mxu0 %v97
  %v354 = vpop.f32.mrb[0].mxu0
  %v355 = vadd.f32 %v93, %v354
  %v356 = vpop.f32.mrb[0].mxu0
  %357 = vmatprep.mubr.f32.mxu0 0.0
  %358 = vmatmul.mubr.f32.gmra.mrb[0].mxu0 %v100
  %v359 = vpop.f32.mrb[0].mxu0
  %v360 = vadd.f32 %v93, %v359
  %v361 = vpop.f32.mrb[0].mxu0
  %362 = vmatprep.mubr.f32.mxu0 0.0
  %363 = vmatmul.mubr.f32.gmra.mrb[0].mxu0 %v103
  %v364 = vpop.f32.mrb[0].mxu0
  %v365 = vadd.f32 %v93, %v364
  %v366 = vpop.f32.mrb[0].mxu0
  %367 = vmatprep.mubr.f32.mxu0 0.0
  %368 = vmatmul.mubr.f32.gmra.mrb[0].mxu0 %v106
  %v369 = vpop.f32.mrb[0].mxu0
  %v370 = vadd.f32 %v93, %v369
  %v371 = vpop.f32.mrb[0].mxu0
  %372 = vmatprep.mubr.f32.mxu0 0.0
  %373 = vmatmul.mubr.f32.gmra.mrb[0].mxu0 %v109
  %v374 = vpop.f32.mrb[0].mxu0
  %v375 = vadd.f32 %v93, %v374
  %v376 = vpop.f32.mrb[0].mxu0
  %377 = vmatprep.mubr.f32.mxu0 0.0
  %378 = vmatmul.mubr.f32.gmra.mrb[0].mxu0 %v112
  %v379 = vpop.f32.mrb[0].mxu0
  %v380 = vadd.f32 %v93, %v379
  %v381 = vpop.f32.mrb[0].mxu0
  %382 = vmatprep.mubr.f32.mxu0 0.0
  %383 = vmatmul.mubr.f32.gmra.mrb[0].mxu0 %v115
  %v384 = vpop.f32.mrb[0].mxu0
  %v385 = vadd.f32 %v93, %v384
  %v386 = vpop.f32.mrb[0].mxu0
  %387 = vmatprep.mubr.f32.mxu0 0.0
  %388 = vmatmul.mubr.f32.gmra.mrb[0].mxu0 %v118
  %v389 = vpop.f32.mrb[0].mxu0
  %v390 = vadd.f32 %v93, %v389
  %v391 = vpop.f32.mrb[0].mxu0
  %392 = vmatprep.mubr.f32.mxu0 0.0
  %393 = vmatmul.mubr.f32.gmra.mrb[0].mxu0 %v121
  %v394 = vpop.f32.mrb[0].mxu0
  %v395 = vadd.f32 %v93, %v394
  %v396 = vpop.f32.mrb[0].mxu0
  %397 = vmatprep.mubr.f32.mxu0 0.0
  %398 = vmatmul.mubr.f32.gmra.mrb[0].mxu0 %v124
  %v399 = vpop.f32.mrb[0].mxu0
  %v400 = vadd.f32 %v93, %v399
  %v401 = vpop.f32.mrb[0].mxu0
  %402 = vmatprep.mubr.f32.mxu0 0.0
  %403 = vmatmul.mubr.f32.gmra.mrb[0].mxu0 %v127
  %v404 = vpop.f32.mrb[0].mxu0
  %v405 = vadd.f32 %v93, %v404
  %v406 = vpop.f32.mrb[0].mxu0
  %407 = vmatprep.mubr.f32.mxu0 0.0
  %408 = vmatmul.mubr.f32.gmra.mrb[0].mxu0 %v130
  %v409 = vpop.f32.mrb[0].mxu0
  %v410 = vadd.f32 %v93, %v409
  %v411 = vpop.f32.mrb[0].mxu0
  %412 = vmatprep.mubr.f32.mxu0 0.0
  %413 = vmatmul.mubr.f32.gmra.mrb[0].mxu0 %v133
  %v414 = vpop.f32.mrb[0].mxu0
  %v415 = vadd.f32 %v93, %v414
  %v416 = vpop.f32.mrb[0].mxu0
  %417 = vmatprep.mubr.f32.mxu0 0.0
  %418 = vmatmul.mubr.f32.gmra.mrb[0].mxu0 %v136
  %v419 = vpop.f32.mrb[0].mxu0
  %v420 = vadd.f32 %v93, %v419
  %v421 = vpop.f32.mrb[0].mxu0
  %422 = vmatprep.mubr.f32.mxu0 0.0
  %423 = vmatmul.mubr.f32.gmra.mrb[0].mxu0 %v139
  %v424 = vpop.f32.mrb[0].mxu0
  %v425 = vadd.f32 %v93, %v424
  %v426 = vpop.f32.mrb[0].mxu0
  %427 = vmatprep.mubr.f32.mxu0 0.0
  %428 = vmatmul.mubr.f32.gmra.mrb[0].mxu0 %v142
  %v429 = vpop.f32.mrb[0].mxu0
  %v430 = vadd.f32 %v93, %v429
  %v431 = vpop.f32.mrb[0].mxu0
  %432 = vmatprep.mubr.f32.mxu0 0.0
  %433 = vmatmul.mubr.f32.gmra.mrb[0].mxu0 %v145
  %v434 = vpop.f32.mrb[0].mxu0
  %v435 = vadd.f32 %v93, %v434
  %v436 = vpop.f32.mrb[0].mxu0
  %437 = vmatprep.mubr.f32.mxu0 0.0
  %438 = vmatmul.mubr.f32.gmra.mrb[0].mxu0 %v148
  %v439 = vpop.f32.mrb[0].mxu0
  %v440 = vadd.f32 %v93, %v439
  %v441 = vpop.f32.mrb[0].mxu0
  %442 = vmatprep.mubr.f32.mxu0 0.0
  %443 = vmatmul.mubr.f32.gmra.mrb[0].mxu0 %v151
  %v444 = vpop.f32.mrb[0].mxu0
  %v445 = vadd.f32 %v93, %v444
  %v446 = vpop.f32.mrb[0].mxu0
  %447 = vmatprep.mubr.f32.mxu0 0.0
  %448 = vmatmul.mubr.f32.gmra.mrb[0].mxu0 %v154
  %v449 = vpop.f32.mrb[0].mxu0
  %v450 = vadd.f32 %v93, %v449
  %v451 = vpop.f32.mrb[0].mxu0
  %452 = vmatprep.mubr.f32.mxu0 0.0
  %453 = vmatmul.mubr.f32.gmra.mrb[0].mxu0 %v157
  %v454 = vpop.f32.mrb[0].mxu0
  %v455 = vadd.f32 %v93, %v454
  %v456 = vpop.f32.mrb[0].mxu0
  %457 = vmatprep.mubr.f32.mxu0 0.0
  %458 = vmatmul.mubr.f32.gmra.mrb[0].mxu0 %v160
  %v459 = vpop.f32.mrb[0].mxu0
  %v460 = vadd.f32 %v93, %v459
  %v461 = vpop.f32.mrb[0].mxu0
  %462 = vmatprep.mubr.f32.mxu0 0.0
  %463 = vmatmul.mubr.f32.gmra.mrb[0].mxu0 %v163
  %v464 = vpop.f32.mrb[0].mxu0
  %v465 = vadd.f32 %v93, %v464
  %v466 = vpop.f32.mrb[0].mxu0
  %467 = vmatprep.mubr.f32.mxu0 0.0
  %468 = vmatmul.mubr.f32.gmra.mrb[0].mxu0 %v166
  %v469 = vpop.f32.mrb[0].mxu0
  %v470 = vadd.f32 %v93, %v469
  %v471 = vpop.f32.mrb[0].mxu0
  %472 = vmatprep.mubr.f32.mxu0 0.0
  %473 = vmatmul.mubr.f32.gmra.mrb[0].mxu0 %v169
  %v474 = vpop.f32.mrb[0].mxu0
  %v475 = vadd.f32 %v93, %v474
  %v476 = vpop.f32.mrb[0].mxu0
  %477 = vmatprep.mubr.f32.mxu0 0.0
  %478 = vmatmul.mubr.f32.gmra.mrb[0].mxu0 %v172
  %v479 = vpop.f32.mrb[0].mxu0
  %v480 = vadd.f32 %v93, %v479
  %v481 = vpop.f32.mrb[0].mxu0
  %482 = vmatprep.mubr.f32.mxu0 0.0
  %483 = vmatmul.mubr.f32.gmra.mrb[0].mxu0 %v175
  %v484 = vpop.f32.mrb[0].mxu0
  %v485 = vadd.f32 %v93, %v484
  %v486 = vpop.f32.mrb[0].mxu0
  %487 = vmatprep.mubr.f32.mxu0 0.0
  %488 = vmatmul.mubr.f32.gmra.mrb[0].mxu0 %v178
  %v489 = vpop.f32.mrb[0].mxu0
  %v490 = vadd.f32 %v93, %v489
  %v491 = vpop.f32.mrb[0].mxu0
  %492 = vmatprep.mubr.f32.mxu0 0.0
  %493 = vmatmul.mubr.f32.gmra.mrb[0].mxu0 %v181
  %v494 = vpop.f32.mrb[0].mxu0
  %v495 = vadd.f32 %v93, %v494
  %v496 = vpop.f32.mrb[0].mxu0
  %497 = vmatprep.mubr.f32.mxu0 0.0
  %498 = vmatmul.mubr.f32.gmra.mrb[0].mxu0 %v184
  %v499 = vpop.f32.mrb[0].mxu0
  %v500 = vadd.f32 %v93, %v499
  %v501 = vpop.f32.mrb[0].mxu0
  %502 = vmatprep.mubr.f32.mxu0 0.0
  %503 = vmatmul.mubr.f32.gmra.mrb[0].mxu0 %v187
  %v504 = vpop.f32.mrb[0].mxu0
  %v505 = vadd.f32 %v93, %v504
  %v506 = vpop.f32.mrb[0].mxu0
  %507 = vmatprep.mubr.f32.mxu0 0.0
  %508 = vmatmul.mubr.f32.gmra.mrb[0].mxu0 %v190
  %v509 = vpop.f32.mrb[0].mxu0
  %v510 = vadd.f32 %v93, %v509
  %v511 = vpop.f32.mrb[0].mxu0
  %512 = vmatprep.mubr.f32.mxu0 0.0
  %513 = vmatmul.mubr.f32.gmra.mrb[0].mxu0 %v193
  %v514 = vpop.f32.mrb[0].mxu0
  %v515 = vadd.f32 %v93, %v514
  %v516 = vpop.f32.mrb[0].mxu0
  %517 = vmatprep.mubr.f32.mxu0 0.0
  %518 = vmatmul.mubr.f32.gmra.mrb[0].mxu0 %v196
  %v519 = vpop.f32.mrb[0].mxu0
  %v520 = vadd.f32 %v93, %v519
  %v521 = vpop.f32.mrb[0].mxu0
  %522 = vmatprep.mubr.f32.mxu0 0.0
  %523 = vmatmul.mubr.f32.gmra.mrb[0].mxu0 %v199
  %v524 = vpop.f32.mrb[0].mxu0
  %v525 = vadd.f32 %v93, %v524
  %v526 = vpop.f32.mrb[0].mxu0
  %527 = vmatprep.mubr.f32.mxu0 0.0
  %528 = vmatmul.mubr.f32.gmra.mrb[0].mxu0 %v202
  %v529 = vpop.f32.mrb[0].mxu0
  %v530 = vadd.f32 %v93, %v529
  %v531 = vpop.f32.mrb[0].mxu0
  %532 = vmatprep.mubr.f32.mxu0 0.0
  %533 = vmatmul.mubr.f32.gmra.mrb[0].mxu0 %v205
  %v534 = vpop.f32.mrb[0].mxu0
  %v535 = vadd.f32 %v93, %v534
  %v536 = vpop.f32.mrb[0].mxu0
  %537 = vmatprep.mubr.f32.mxu0 0.0
  %538 = vmatmul.mubr.f32.gmra.mrb[0].mxu0 %v208
  %v539 = vpop.f32.mrb[0].mxu0
  %v540 = vadd.f32 %v93, %v539
  %v541 = vpop.f32.mrb[0].mxu0
  %542 = vmatprep.mubr.f32.mxu0 0.0
  %543 = vmatmul.mubr.f32.gmra.mrb[0].mxu0 %v211
  %v544 = vpop.f32.mrb[0].mxu0
  %v545 = vadd.f32 %v93, %v544
  %v546 = vpop.f32.mrb[0].mxu0
  %547 = vmatprep.mubr.f32.mxu0 0.0
  %548 = vmatmul.mubr.f32.gmra.mrb[0].mxu0 %v214
  %v549 = vpop.f32.mrb[0].mxu0
  %v550 = vadd.f32 %v93, %v549
  %v551 = vpop.f32.mrb[0].mxu0
  %552 = vmatprep.mubr.f32.mxu0 0.0
  %553 = vmatmul.mubr.f32.gmra.mrb[0].mxu0 %v217
  %v554 = vpop.f32.mrb[0].mxu0
  %v555 = vadd.f32 %v93, %v554
  %v556 = vpop.f32.mrb[0].mxu0
  %557 = vmatprep.mubr.f32.mxu0 0.0
  %558 = vmatmul.mubr.f32.gmra.mrb[0].mxu0 %v220
  %v559 = vpop.f32.mrb[0].mxu0
  %v560 = vadd.f32 %v93, %v559
  %v561 = vpop.f32.mrb[0].mxu0
  %562 = vmatprep.mubr.f32.mxu0 0.0
  %563 = vmatmul.mubr.f32.gmra.mrb[0].mxu0 %v223
  %v564 = vpop.f32.mrb[0].mxu0
  %v565 = vadd.f32 %v93, %v564
  %v566 = vpop.f32.mrb[0].mxu0
  %567 = vmatprep.mubr.f32.mxu0 0.0
  %568 = vmatmul.mubr.f32.gmra.mrb[0].mxu0 %v226
  %v569 = vpop.f32.mrb[0].mxu0
  %v570 = vadd.f32 %v93, %v569
  %v571 = vpop.f32.mrb[0].mxu0
  %572 = vmatprep.mubr.f32.mxu0 0.0
  %573 = vmatmul.mubr.f32.gmra.mrb[0].mxu0 %v229
  %v574 = vpop.f32.mrb[0].mxu0
  %v575 = vadd.f32 %v93, %v574
  %v576 = vpop.f32.mrb[0].mxu0
  %577 = vmatprep.mubr.f32.mxu0 0.0
  %578 = vmatmul.mubr.f32.gmra.mrb[0].mxu0 %v232
  %v579 = vpop.f32.mrb[0].mxu0
  %v580 = vadd.f32 %v93, %v579
  %v581 = vpop.f32.mrb[0].mxu0
  %582 = vmatprep.mubr.f32.mxu0 0.0
  %583 = vmatmul.mubr.f32.gmra.mrb[0].mxu0 %v235
  %v584 = vpop.f32.mrb[0].mxu0
  %v585 = vadd.f32 %v93, %v584
  %v586 = vpop.f32.mrb[0].mxu0
  %587 = vmatprep.mubr.f32.mxu0 0.0
  %588 = vmatmul.mubr.f32.gmra.mrb[0].mxu0 %v238
  %v589 = vpop.f32.mrb[0].mxu0
  %v590 = vadd.f32 %v93, %v589
  %v591 = vpop.f32.mrb[0].mxu0
  %592 = vmatprep.mubr.f32.mxu0 0.0
  %593 = vmatmul.mubr.f32.gmra.mrb[0].mxu0 %v241
  %v594 = vpop.f32.mrb[0].mxu0
  %v595 = vadd.f32 %v93, %v594
  %v596 = vpop.f32.mrb[0].mxu0
  %597 = vmatprep.mubr.f32.mxu0 0.0
  %598 = vmatmul.mubr.f32.gmra.mrb[0].mxu0 %v244
  %v599 = vpop.f32.mrb[0].mxu0
  %v600 = vadd.f32 %v93, %v599
  %v601 = vpop.f32.mrb[0].mxu0
  %602 = vmatprep.mubr.f32.mxu0 0.0
  %603 = vmatmul.mubr.f32.gmra.mrb[0].mxu0 %v247
  %v604 = vpop.f32.mrb[0].mxu0
  %v605 = vadd.f32 %v93, %v604
  %v606 = vpop.f32.mrb[0].mxu0
  %607 = vmatprep.mubr.f32.mxu0 0.0
  %608 = vmatmul.mubr.f32.gmra.mrb[0].mxu0 %v250
  %v609 = vpop.f32.mrb[0].mxu0
  %v610 = vadd.f32 %v93, %v609
  %v611 = vpop.f32.mrb[0].mxu0
  %612 = vmatprep.mubr.f32.mxu0 0.0
  %613 = vmatmul.mubr.f32.gmra.mrb[0].mxu0 %v253
  %v614 = vpop.f32.mrb[0].mxu0
  %v615 = vadd.f32 %v93, %v614
  %v616 = vpop.f32.mrb[0].mxu0
  %617 = vmatprep.mubr.f32.mxu0 0.0
  %618 = vmatmul.mubr.f32.gmra.mrb[0].mxu0 %v256
  %v619 = vpop.f32.mrb[0].mxu0
  %v620 = vadd.f32 %v93, %v619
  %v621 = vpop.f32.mrb[0].mxu0
  %622 = vmatprep.mubr.f32.mxu0 0.0
  %623 = vmatmul.mubr.f32.gmra.mrb[0].mxu0 %v259
  %v624 = vpop.f32.mrb[0].mxu0
  %v625 = vadd.f32 %v93, %v624
  %v626 = vpop.f32.mrb[0].mxu0
  %627 = vmatprep.mubr.f32.mxu0 0.0
  %628 = vmatmul.mubr.f32.gmra.mrb[0].mxu0 %v262
  %v629 = vpop.f32.mrb[0].mxu0
  %v630 = vadd.f32 %v93, %v629
  %v631 = vpop.f32.mrb[0].mxu0
  %632 = vmatprep.mubr.f32.mxu0 0.0
  %633 = vmatmul.mubr.f32.gmra.mrb[0].mxu0 %v265
  %v634 = vpop.f32.mrb[0].mxu0
  %v635 = vadd.f32 %v93, %v634
  %v636 = vpop.f32.mrb[0].mxu0
  %637 = vmatprep.mubr.f32.mxu0 0.0
  %638 = vmatmul.mubr.f32.gmra.mrb[0].mxu0 %v268
  %v639 = vpop.f32.mrb[0].mxu0
  %v640 = vadd.f32 %v93, %v639
  %v641 = vpop.f32.mrb[0].mxu0
  %642 = vmatprep.mubr.f32.mxu0 0.0
  %643 = vmatmul.mubr.f32.gmra.mrb[0].mxu0 %v271
  %v644 = vpop.f32.mrb[0].mxu0
  %v645 = vadd.f32 %v93, %v644
  %v646 = vpop.f32.mrb[0].mxu0
  %647 = vmatprep.mubr.f32.mxu0 0.0
  %648 = vmatmul.mubr.f32.gmra.mrb[0].mxu0 %v274
  %v649 = vpop.f32.mrb[0].mxu0
  %v650 = vadd.f32 %v93, %v649
  %v651 = vpop.f32.mrb[0].mxu0
  %652 = vmatprep.mubr.f32.mxu0 0.0
  %653 = vmatmul.mubr.f32.gmra.mrb[0].mxu0 %v277
  %v654 = vpop.f32.mrb[0].mxu0
  %v655 = vadd.f32 %v93, %v654
  %v656 = vpop.f32.mrb[0].mxu0
  %657 = vmatprep.mubr.f32.mxu0 0.0
  %658 = vmatmul.mubr.f32.gmra.mrb[0].mxu0 %v280
  %v659 = vpop.f32.mrb[0].mxu0
  %v660 = vadd.f32 %v93, %v659
  %v661 = vpop.f32.mrb[0].mxu0
  %662 = vmatprep.mubr.f32.mxu0 0.0
  %663 = vmatmul.mubr.f32.gmra.mrb[0].mxu0 %v283
  %v664 = vpop.f32.mrb[0].mxu0
  %v665 = vadd.f32 %v93, %v664
  %v666 = vpop.f32.mrb[0].mxu0
  %667 = vmatprep.mubr.f32.mxu0 0.0
  %668 = vmatmul.mubr.f32.gmra.mrb[0].mxu0 %v286
  %v669 = vpop.f32.mrb[0].mxu0
  %v670 = vadd.f32 %v93, %v669
  %v671 = vpop.f32.mrb[0].mxu0
  %672 = vdwg.mxu0
  %v673 = vmax.f32 %v355, 0.0
  %v674 = vmax.f32 %v360, 0.0
  %v675 = vmax.f32 %v365, 0.0
  %v676 = vmax.f32 %v370, 0.0
  %v677 = vmax.f32 %v375, 0.0
  %v678 = vmax.f32 %v380, 0.0
  %v679 = vmax.f32 %v385, 0.0
  %v680 = vmax.f32 %v390, 0.0
  %v681 = vmax.f32 %v395, 0.0
  %v682 = vmax.f32 %v400, 0.0
  %v683 = vmax.f32 %v405, 0.0
  %v684 = vmax.f32 %v410, 0.0
  %v685 = vmax.f32 %v415, 0.0
  %v686 = vmax.f32 %v420, 0.0
  %v687 = vmax.f32 %v425, 0.0
  %v688 = vmax.f32 %v430, 0.0
  %v689 = vmax.f32 %v435, 0.0
  %v690 = vmax.f32 %v440, 0.0
  %v691 = vmax.f32 %v445, 0.0
  %v692 = vmax.f32 %v450, 0.0
  %v693 = vmax.f32 %v455, 0.0
  %v694 = vmax.f32 %v460, 0.0
  %v695 = vmax.f32 %v465, 0.0
  %v696 = vmax.f32 %v470, 0.0
  %v697 = vmax.f32 %v475, 0.0
  %v698 = vmax.f32 %v480, 0.0
  %v699 = vmax.f32 %v485, 0.0
  %v700 = vmax.f32 %v490, 0.0
  %v701 = vmax.f32 %v495, 0.0
  %v702 = vmax.f32 %v500, 0.0
  %v703 = vmax.f32 %v505, 0.0
  %v704 = vmax.f32 %v510, 0.0
  %v705 = vmax.f32 %v515, 0.0
  %v706 = vmax.f32 %v520, 0.0
  %v707 = vmax.f32 %v525, 0.0
  %v708 = vmax.f32 %v530, 0.0
  %v709 = vmax.f32 %v535, 0.0
  %v710 = vmax.f32 %v540, 0.0
  %v711 = vmax.f32 %v545, 0.0
  %v712 = vmax.f32 %v550, 0.0
  %v713 = vmax.f32 %v555, 0.0
  %v714 = vmax.f32 %v560, 0.0
  %v715 = vmax.f32 %v565, 0.0
  %v716 = vmax.f32 %v570, 0.0
  %v717 = vmax.f32 %v575, 0.0
  %v718 = vmax.f32 %v580, 0.0
  %v719 = vmax.f32 %v585, 0.0
  %v720 = vmax.f32 %v590, 0.0
  %v721 = vmax.f32 %v595, 0.0
  %v722 = vmax.f32 %v600, 0.0
  %v723 = vmax.f32 %v605, 0.0
  %v724 = vmax.f32 %v610, 0.0
  %v725 = vmax.f32 %v615, 0.0
  %v726 = vmax.f32 %v620, 0.0
  %v727 = vmax.f32 %v625, 0.0
  %v728 = vmax.f32 %v630, 0.0
  %v729 = vmax.f32 %v635, 0.0
  %v730 = vmax.f32 %v640, 0.0
  %v731 = vmax.f32 %v645, 0.0
  %v732 = vmax.f32 %v650, 0.0
  %v733 = vmax.f32 %v655, 0.0
  %v734 = vmax.f32 %v660, 0.0
  %v735 = vmax.f32 %v665, 0.0
  %v736 = vmax.f32 %v670, 0.0
  %v737 = vld [vmem:[%s3] sm:$0xff]
  %v738 = vld [vmem:[%s3 + $0x8] sm:$0xff]
  %v739 = vld [vmem:[%s4] sm:$0x1]
  %v741 = vlaneseq
  %v742 = vshrl.u32 %v741, 7
  %v743 = vsub.s32 0, %v742
  %v744 = vrot.slane %v739, %v743
  %vm746 = vcmask 130048
  %v748 = vsel %vm746, %v673, 0
  %v751 = vsel %vm746, %v674, 0
  %v754 = vsel %vm746, %v675, 0
  %v757 = vsel %vm746, %v676, 0
  %v760 = vsel %vm746, %v677, 0
  %v763 = vsel %vm746, %v678, 0
  %v766 = vsel %vm746, %v679, 0
  %v769 = vsel %vm746, %v680, 0
  %v772 = vsel %vm746, %v681, 0
  %v775 = vsel %vm746, %v682, 0
  %v778 = vsel %vm746, %v683, 0
  %v781 = vsel %vm746, %v684, 0
  %v784 = vsel %vm746, %v685, 0
  %v787 = vsel %vm746, %v686, 0
  %v790 = vsel %vm746, %v687, 0
  %v793 = vsel %vm746, %v688, 0
  %v796 = vsel %vm746, %v689, 0
  %v799 = vsel %vm746, %v690, 0
  %v802 = vsel %vm746, %v691, 0
  %v805 = vsel %vm746, %v692, 0
  %v808 = vsel %vm746, %v693, 0
  %v811 = vsel %vm746, %v694, 0
  %v814 = vsel %vm746, %v695, 0
  %v817 = vsel %vm746, %v696, 0
  %v820 = vsel %vm746, %v697, 0
  %v823 = vsel %vm746, %v698, 0
  %v826 = vsel %vm746, %v699, 0
  %v829 = vsel %vm746, %v700, 0
  %v832 = vsel %vm746, %v701, 0
  %v835 = vsel %vm746, %v702, 0
  %v838 = vsel %vm746, %v703, 0
  %v841 = vsel %vm746, %v704, 0
  %v844 = vsel %vm746, %v705, 0
  %v847 = vsel %vm746, %v706, 0
  %v850 = vsel %vm746, %v707, 0
  %v853 = vsel %vm746, %v708, 0
  %v856 = vsel %vm746, %v709, 0
  %v859 = vsel %vm746, %v710, 0
  %v862 = vsel %vm746, %v711, 0
  %v865 = vsel %vm746, %v712, 0
  %v868 = vsel %vm746, %v713, 0
  %v871 = vsel %vm746, %v714, 0
  %v874 = vsel %vm746, %v715, 0
  %v877 = vsel %vm746, %v716, 0
  %v880 = vsel %vm746, %v717, 0
  %v883 = vsel %vm746, %v718, 0
  %v886 = vsel %vm746, %v719, 0
  %v889 = vsel %vm746, %v720, 0
  %v892 = vsel %vm746, %v721, 0
  %v895 = vsel %vm746, %v722, 0
  %v898 = vsel %vm746, %v723, 0
  %v901 = vsel %vm746, %v724, 0
  %v904 = vsel %vm746, %v725, 0
  %v907 = vsel %vm746, %v726, 0
  %v910 = vsel %vm746, %v727, 0
  %v913 = vsel %vm746, %v728, 0
  %v916 = vsel %vm746, %v729, 0
  %v919 = vsel %vm746, %v730, 0
  %v922 = vsel %vm746, %v731, 0
  %v925 = vsel %vm746, %v732, 0
  %v928 = vsel %vm746, %v733, 0
  %v931 = vsel %vm746, %v734, 0
  %v934 = vsel %vm746, %v735, 0
  %v937 = vsel %vm746, %v736, 0
  %939 = vmatprep.subr.mxu0 0.0
  %940 = vmatpush1.msra.mxu0 %v737
  %941 = vmatprep.subr.mxu0 0.0
  %942 = vmatpush1.msra.mxu0 %v738
  %943 = vmatprep.subr.mxu0 0.0
  %944 = vmatpush1.msra.mxu0 0.0
  %945 = vmatprep.subr.mxu0 0.0
  %946 = vmatpush1.msra.mxu0 0.0
  %947 = vmatprep.subr.mxu0 0.0
  %948 = vmatpush1.msra.mxu0 0.0
  %949 = vmatprep.subr.mxu0 0.0
  %950 = vmatpush1.msra.mxu0 0.0
  %951 = vmatprep.subr.mxu0 0.0
  %952 = vmatpush1.msra.mxu0 0.0
  %953 = vmatprep.subr.mxu0 0.0
  %954 = vmatpush1.msra.mxu0 0.0
  %955 = vmatprep.subr.mxu0 0.0
  %956 = vmatpush1.msra.mxu0 0.0
  %957 = vmatprep.subr.mxu0 0.0
  %958 = vmatpush1.msra.mxu0 0.0
  %959 = vmatprep.subr.mxu0 0.0
  %960 = vmatpush1.msra.mxu0 0.0
  %961 = vmatprep.subr.mxu0 0.0
  %962 = vmatpush1.msra.mxu0 0.0
  %963 = vmatprep.subr.mxu0 0.0
  %964 = vmatpush1.msra.mxu0 0.0
  %965 = vmatprep.subr.mxu0 0.0
  %966 = vmatpush1.msra.mxu0 0.0
  %967 = vmatprep.subr.mxu0 0.0
  %968 = vmatpush1.msra.mxu0 0.0
  %969 = vmatprep.subr.mxu0 0.0
  %970 = vmatpush1.msra.mxu0 0.0
  %971 = vmatprep.subr.mxu0 0.0
  %972 = vmatpush1.msra.mxu0 0.0
  %973 = vmatprep.subr.mxu0 0.0
  %974 = vmatpush1.msra.mxu0 0.0
  %975 = vmatprep.subr.mxu0 0.0
  %976 = vmatpush1.msra.mxu0 0.0
  %977 = vmatprep.subr.mxu0 0.0
  %978 = vmatpush1.msra.mxu0 0.0
  %979 = vmatprep.subr.mxu0 0.0
  %980 = vmatpush1.msra.mxu0 0.0
  %981 = vmatprep.subr.mxu0 0.0
  %982 = vmatpush1.msra.mxu0 0.0
  %983 = vmatprep.subr.mxu0 0.0
  %984 = vmatpush1.msra.mxu0 0.0
  %985 = vmatprep.subr.mxu0 0.0
  %986 = vmatpush1.msra.mxu0 0.0
  %987 = vmatprep.subr.mxu0 0.0
  %988 = vmatpush1.msra.mxu0 0.0
  %989 = vmatprep.subr.mxu0 0.0
  %990 = vmatpush1.msra.mxu0 0.0
  %991 = vmatprep.subr.mxu0 0.0
  %992 = vmatpush1.msra.mxu0 0.0
  %993 = vmatprep.subr.mxu0 0.0
  %994 = vmatpush1.msra.mxu0 0.0
  %995 = vmatprep.subr.mxu0 0.0
  %996 = vmatpush1.msra.mxu0 0.0
  %997 = vmatprep.subr.mxu0 0.0
  %998 = vmatpush1.msra.mxu0 0.0
  %999 = vmatprep.subr.mxu0 0.0
  %1000 = vmatpush1.msra.mxu0 0.0
  %1001 = vmatprep.subr.mxu0 0.0
  %1002 = vmatpush1.msra.mxu0 0.0
  %1003 = vmatprep.mubr.f32.mxu0 0.0
  %1004 = vmatmul.mubr.f32.gmra.mrb[0].mxu0 %v748
  %v1005 = vpop.f32.mrb[0].mxu0
  %v1006 = vadd.f32 %v744, %v1005
  %v1007 = vpop.f32.mrb[0].mxu0
  %1008 = vmatprep.mubr.f32.mxu0 0.0
  %1009 = vmatmul.mubr.f32.gmra.mrb[0].mxu0 %v751
  %v1010 = vpop.f32.mrb[0].mxu0
  %v1011 = vadd.f32 %v744, %v1010
  %v1012 = vpop.f32.mrb[0].mxu0
  %1013 = vmatprep.mubr.f32.mxu0 0.0
  %1014 = vmatmul.mubr.f32.gmra.mrb[0].mxu0 %v754
  %v1015 = vpop.f32.mrb[0].mxu0
  %v1016 = vadd.f32 %v744, %v1015
  %v1017 = vpop.f32.mrb[0].mxu0
  %1018 = vmatprep.mubr.f32.mxu0 0.0
  %1019 = vmatmul.mubr.f32.gmra.mrb[0].mxu0 %v757
  %v1020 = vpop.f32.mrb[0].mxu0
  %v1021 = vadd.f32 %v744, %v1020
  %v1022 = vpop.f32.mrb[0].mxu0
  %1023 = vmatprep.mubr.f32.mxu0 0.0
  %1024 = vmatmul.mubr.f32.gmra.mrb[0].mxu0 %v760
  %v1025 = vpop.f32.mrb[0].mxu0
  %v1026 = vadd.f32 %v744, %v1025
  %v1027 = vpop.f32.mrb[0].mxu0
  %1028 = vmatprep.mubr.f32.mxu0 0.0
  %1029 = vmatmul.mubr.f32.gmra.mrb[0].mxu0 %v763
  %v1030 = vpop.f32.mrb[0].mxu0
  %v1031 = vadd.f32 %v744, %v1030
  %v1032 = vpop.f32.mrb[0].mxu0
  %1033 = vmatprep.mubr.f32.mxu0 0.0
  %1034 = vmatmul.mubr.f32.gmra.mrb[0].mxu0 %v766
  %v1035 = vpop.f32.mrb[0].mxu0
  %v1036 = vadd.f32 %v744, %v1035
  %v1037 = vpop.f32.mrb[0].mxu0
  %1038 = vmatprep.mubr.f32.mxu0 0.0
  %1039 = vmatmul.mubr.f32.gmra.mrb[0].mxu0 %v769
  %v1040 = vpop.f32.mrb[0].mxu0
  %v1041 = vadd.f32 %v744, %v1040
  %v1042 = vpop.f32.mrb[0].mxu0
  %1043 = vmatprep.mubr.f32.mxu0 0.0
  %1044 = vmatmul.mubr.f32.gmra.mrb[0].mxu0 %v772
  %v1045 = vpop.f32.mrb[0].mxu0
  %v1046 = vadd.f32 %v744, %v1045
  %v1047 = vpop.f32.mrb[0].mxu0
  %1048 = vmatprep.mubr.f32.mxu0 0.0
  %1049 = vmatmul.mubr.f32.gmra.mrb[0].mxu0 %v775
  %v1050 = vpop.f32.mrb[0].mxu0
  %v1051 = vadd.f32 %v744, %v1050
  %v1052 = vpop.f32.mrb[0].mxu0
  %1053 = vmatprep.mubr.f32.mxu0 0.0
  %1054 = vmatmul.mubr.f32.gmra.mrb[0].mxu0 %v778
  %v1055 = vpop.f32.mrb[0].mxu0
  %v1056 = vadd.f32 %v744, %v1055
  %v1057 = vpop.f32.mrb[0].mxu0
  %1058 = vmatprep.mubr.f32.mxu0 0.0
  %1059 = vmatmul.mubr.f32.gmra.mrb[0].mxu0 %v781
  %v1060 = vpop.f32.mrb[0].mxu0
  %v1061 = vadd.f32 %v744, %v1060
  %v1062 = vpop.f32.mrb[0].mxu0
  %1063 = vmatprep.mubr.f32.mxu0 0.0
  %1064 = vmatmul.mubr.f32.gmra.mrb[0].mxu0 %v784
  %v1065 = vpop.f32.mrb[0].mxu0
  %v1066 = vadd.f32 %v744, %v1065
  %v1067 = vpop.f32.mrb[0].mxu0
  %1068 = vmatprep.mubr.f32.mxu0 0.0
  %1069 = vmatmul.mubr.f32.gmra.mrb[0].mxu0 %v787
  %v1070 = vpop.f32.mrb[0].mxu0
  %v1071 = vadd.f32 %v744, %v1070
  %v1072 = vpop.f32.mrb[0].mxu0
  %1073 = vmatprep.mubr.f32.mxu0 0.0
  %1074 = vmatmul.mubr.f32.gmra.mrb[0].mxu0 %v790
  %v1075 = vpop.f32.mrb[0].mxu0
  %v1076 = vadd.f32 %v744, %v1075
  %v1077 = vpop.f32.mrb[0].mxu0
  %1078 = vmatprep.mubr.f32.mxu0 0.0
  %1079 = vmatmul.mubr.f32.gmra.mrb[0].mxu0 %v793
  %v1080 = vpop.f32.mrb[0].mxu0
  %v1081 = vadd.f32 %v744, %v1080
  %v1082 = vpop.f32.mrb[0].mxu0
  %1083 = vmatprep.mubr.f32.mxu0 0.0
  %1084 = vmatmul.mubr.f32.gmra.mrb[0].mxu0 %v796
  %v1085 = vpop.f32.mrb[0].mxu0
  %v1086 = vadd.f32 %v744, %v1085
  %v1087 = vpop.f32.mrb[0].mxu0
  %1088 = vmatprep.mubr.f32.mxu0 0.0
  %1089 = vmatmul.mubr.f32.gmra.mrb[0].mxu0 %v799
  %v1090 = vpop.f32.mrb[0].mxu0
  %v1091 = vadd.f32 %v744, %v1090
  %v1092 = vpop.f32.mrb[0].mxu0
  %1093 = vmatprep.mubr.f32.mxu0 0.0
  %1094 = vmatmul.mubr.f32.gmra.mrb[0].mxu0 %v802
  %v1095 = vpop.f32.mrb[0].mxu0
  %v1096 = vadd.f32 %v744, %v1095
  %v1097 = vpop.f32.mrb[0].mxu0
  %1098 = vmatprep.mubr.f32.mxu0 0.0
  %1099 = vmatmul.mubr.f32.gmra.mrb[0].mxu0 %v805
  %v1100 = vpop.f32.mrb[0].mxu0
  %v1101 = vadd.f32 %v744, %v1100
  %v1102 = vpop.f32.mrb[0].mxu0
  %1103 = vmatprep.mubr.f32.mxu0 0.0
  %1104 = vmatmul.mubr.f32.gmra.mrb[0].mxu0 %v808
  %v1105 = vpop.f32.mrb[0].mxu0
  %v1106 = vadd.f32 %v744, %v1105
  %v1107 = vpop.f32.mrb[0].mxu0
  %1108 = vmatprep.mubr.f32.mxu0 0.0
  %1109 = vmatmul.mubr.f32.gmra.mrb[0].mxu0 %v811
  %v1110 = vpop.f32.mrb[0].mxu0
  %v1111 = vadd.f32 %v744, %v1110
  %v1112 = vpop.f32.mrb[0].mxu0
  %1113 = vmatprep.mubr.f32.mxu0 0.0
  %1114 = vmatmul.mubr.f32.gmra.mrb[0].mxu0 %v814
  %v1115 = vpop.f32.mrb[0].mxu0
  %v1116 = vadd.f32 %v744, %v1115
  %v1117 = vpop.f32.mrb[0].mxu0
  %1118 = vmatprep.mubr.f32.mxu0 0.0
  %1119 = vmatmul.mubr.f32.gmra.mrb[0].mxu0 %v817
  %v1120 = vpop.f32.mrb[0].mxu0
  %v1121 = vadd.f32 %v744, %v1120
  %v1122 = vpop.f32.mrb[0].mxu0
  %1123 = vmatprep.mubr.f32.mxu0 0.0
  %1124 = vmatmul.mubr.f32.gmra.mrb[0].mxu0 %v820
  %v1125 = vpop.f32.mrb[0].mxu0
  %v1126 = vadd.f32 %v744, %v1125
  %v1127 = vpop.f32.mrb[0].mxu0
  %1128 = vmatprep.mubr.f32.mxu0 0.0
  %1129 = vmatmul.mubr.f32.gmra.mrb[0].mxu0 %v823
  %v1130 = vpop.f32.mrb[0].mxu0
  %v1131 = vadd.f32 %v744, %v1130
  %v1132 = vpop.f32.mrb[0].mxu0
  %1133 = vmatprep.mubr.f32.mxu0 0.0
  %1134 = vmatmul.mubr.f32.gmra.mrb[0].mxu0 %v826
  %v1135 = vpop.f32.mrb[0].mxu0
  %v1136 = vadd.f32 %v744, %v1135
  %v1137 = vpop.f32.mrb[0].mxu0
  %1138 = vmatprep.mubr.f32.mxu0 0.0
  %1139 = vmatmul.mubr.f32.gmra.mrb[0].mxu0 %v829
  %v1140 = vpop.f32.mrb[0].mxu0
  %v1141 = vadd.f32 %v744, %v1140
  %v1142 = vpop.f32.mrb[0].mxu0
  %1143 = vmatprep.mubr.f32.mxu0 0.0
  %1144 = vmatmul.mubr.f32.gmra.mrb[0].mxu0 %v832
  %v1145 = vpop.f32.mrb[0].mxu0
  %v1146 = vadd.f32 %v744, %v1145
  %v1147 = vpop.f32.mrb[0].mxu0
  %1148 = vmatprep.mubr.f32.mxu0 0.0
  %1149 = vmatmul.mubr.f32.gmra.mrb[0].mxu0 %v835
  %v1150 = vpop.f32.mrb[0].mxu0
  %v1151 = vadd.f32 %v744, %v1150
  %v1152 = vpop.f32.mrb[0].mxu0
  %1153 = vmatprep.mubr.f32.mxu0 0.0
  %1154 = vmatmul.mubr.f32.gmra.mrb[0].mxu0 %v838
  %v1155 = vpop.f32.mrb[0].mxu0
  %v1156 = vadd.f32 %v744, %v1155
  %v1157 = vpop.f32.mrb[0].mxu0
  %1158 = vmatprep.mubr.f32.mxu0 0.0
  %1159 = vmatmul.mubr.f32.gmra.mrb[0].mxu0 %v841
  %v1160 = vpop.f32.mrb[0].mxu0
  %v1161 = vadd.f32 %v744, %v1160
  %v1162 = vpop.f32.mrb[0].mxu0
  %1163 = vmatprep.mubr.f32.mxu0 0.0
  %1164 = vmatmul.mubr.f32.gmra.mrb[0].mxu0 %v844
  %v1165 = vpop.f32.mrb[0].mxu0
  %v1166 = vadd.f32 %v744, %v1165
  %v1167 = vpop.f32.mrb[0].mxu0
  %1168 = vmatprep.mubr.f32.mxu0 0.0
  %1169 = vmatmul.mubr.f32.gmra.mrb[0].mxu0 %v847
  %v1170 = vpop.f32.mrb[0].mxu0
  %v1171 = vadd.f32 %v744, %v1170
  %v1172 = vpop.f32.mrb[0].mxu0
  %1173 = vmatprep.mubr.f32.mxu0 0.0
  %1174 = vmatmul.mubr.f32.gmra.mrb[0].mxu0 %v850
  %v1175 = vpop.f32.mrb[0].mxu0
  %v1176 = vadd.f32 %v744, %v1175
  %v1177 = vpop.f32.mrb[0].mxu0
  %1178 = vmatprep.mubr.f32.mxu0 0.0
  %1179 = vmatmul.mubr.f32.gmra.mrb[0].mxu0 %v853
  %v1180 = vpop.f32.mrb[0].mxu0
  %v1181 = vadd.f32 %v744, %v1180
  %v1182 = vpop.f32.mrb[0].mxu0
  %1183 = vmatprep.mubr.f32.mxu0 0.0
  %1184 = vmatmul.mubr.f32.gmra.mrb[0].mxu0 %v856
  %v1185 = vpop.f32.mrb[0].mxu0
  %v1186 = vadd.f32 %v744, %v1185
  %v1187 = vpop.f32.mrb[0].mxu0
  %1188 = vmatprep.mubr.f32.mxu0 0.0
  %1189 = vmatmul.mubr.f32.gmra.mrb[0].mxu0 %v859
  %v1190 = vpop.f32.mrb[0].mxu0
  %v1191 = vadd.f32 %v744, %v1190
  %v1192 = vpop.f32.mrb[0].mxu0
  %1193 = vmatprep.mubr.f32.mxu0 0.0
  %1194 = vmatmul.mubr.f32.gmra.mrb[0].mxu0 %v862
  %v1195 = vpop.f32.mrb[0].mxu0
  %v1196 = vadd.f32 %v744, %v1195
  %v1197 = vpop.f32.mrb[0].mxu0
  %1198 = vmatprep.mubr.f32.mxu0 0.0
  %1199 = vmatmul.mubr.f32.gmra.mrb[0].mxu0 %v865
  %v1200 = vpop.f32.mrb[0].mxu0
  %v1201 = vadd.f32 %v744, %v1200
  %v1202 = vpop.f32.mrb[0].mxu0
  %1203 = vmatprep.mubr.f32.mxu0 0.0
  %1204 = vmatmul.mubr.f32.gmra.mrb[0].mxu0 %v868
  %v1205 = vpop.f32.mrb[0].mxu0
  %v1206 = vadd.f32 %v744, %v1205
  %v1207 = vpop.f32.mrb[0].mxu0
  %1208 = vmatprep.mubr.f32.mxu0 0.0
  %1209 = vmatmul.mubr.f32.gmra.mrb[0].mxu0 %v871
  %v1210 = vpop.f32.mrb[0].mxu0
  %v1211 = vadd.f32 %v744, %v1210
  %v1212 = vpop.f32.mrb[0].mxu0
  %1213 = vmatprep.mubr.f32.mxu0 0.0
  %1214 = vmatmul.mubr.f32.gmra.mrb[0].mxu0 %v874
  %v1215 = vpop.f32.mrb[0].mxu0
  %v1216 = vadd.f32 %v744, %v1215
  %v1217 = vpop.f32.mrb[0].mxu0
  %1218 = vmatprep.mubr.f32.mxu0 0.0
  %1219 = vmatmul.mubr.f32.gmra.mrb[0].mxu0 %v877
  %v1220 = vpop.f32.mrb[0].mxu0
  %v1221 = vadd.f32 %v744, %v1220
  %v1222 = vpop.f32.mrb[0].mxu0
  %1223 = vmatprep.mubr.f32.mxu0 0.0
  %1224 = vmatmul.mubr.f32.gmra.mrb[0].mxu0 %v880
  %v1225 = vpop.f32.mrb[0].mxu0
  %v1226 = vadd.f32 %v744, %v1225
  %v1227 = vpop.f32.mrb[0].mxu0
  %1228 = vmatprep.mubr.f32.mxu0 0.0
  %1229 = vmatmul.mubr.f32.gmra.mrb[0].mxu0 %v883
  %v1230 = vpop.f32.mrb[0].mxu0
  %v1231 = vadd.f32 %v744, %v1230
  %v1232 = vpop.f32.mrb[0].mxu0
  %1233 = vmatprep.mubr.f32.mxu0 0.0
  %1234 = vmatmul.mubr.f32.gmra.mrb[0].mxu0 %v886
  %v1235 = vpop.f32.mrb[0].mxu0
  %v1236 = vadd.f32 %v744, %v1235
  %v1237 = vpop.f32.mrb[0].mxu0
  %1238 = vmatprep.mubr.f32.mxu0 0.0
  %1239 = vmatmul.mubr.f32.gmra.mrb[0].mxu0 %v889
  %v1240 = vpop.f32.mrb[0].mxu0
  %v1241 = vadd.f32 %v744, %v1240
  %v1242 = vpop.f32.mrb[0].mxu0
  %1243 = vmatprep.mubr.f32.mxu0 0.0
  %1244 = vmatmul.mubr.f32.gmra.mrb[0].mxu0 %v892
  %v1245 = vpop.f32.mrb[0].mxu0
  %v1246 = vadd.f32 %v744, %v1245
  %v1247 = vpop.f32.mrb[0].mxu0
  %1248 = vmatprep.mubr.f32.mxu0 0.0
  %1249 = vmatmul.mubr.f32.gmra.mrb[0].mxu0 %v895
  %v1250 = vpop.f32.mrb[0].mxu0
  %v1251 = vadd.f32 %v744, %v1250
  %v1252 = vpop.f32.mrb[0].mxu0
  %1253 = vmatprep.mubr.f32.mxu0 0.0
  %1254 = vmatmul.mubr.f32.gmra.mrb[0].mxu0 %v898
  %v1255 = vpop.f32.mrb[0].mxu0
  %v1256 = vadd.f32 %v744, %v1255
  %v1257 = vpop.f32.mrb[0].mxu0
  %1258 = vmatprep.mubr.f32.mxu0 0.0
  %1259 = vmatmul.mubr.f32.gmra.mrb[0].mxu0 %v901
  %v1260 = vpop.f32.mrb[0].mxu0
  %v1261 = vadd.f32 %v744, %v1260
  %v1262 = vpop.f32.mrb[0].mxu0
  %1263 = vmatprep.mubr.f32.mxu0 0.0
  %1264 = vmatmul.mubr.f32.gmra.mrb[0].mxu0 %v904
  %v1265 = vpop.f32.mrb[0].mxu0
  %v1266 = vadd.f32 %v744, %v1265
  %v1267 = vpop.f32.mrb[0].mxu0
  %1268 = vmatprep.mubr.f32.mxu0 0.0
  %1269 = vmatmul.mubr.f32.gmra.mrb[0].mxu0 %v907
  %v1270 = vpop.f32.mrb[0].mxu0
  %v1271 = vadd.f32 %v744, %v1270
  %v1272 = vpop.f32.mrb[0].mxu0
  %1273 = vmatprep.mubr.f32.mxu0 0.0
  %1274 = vmatmul.mubr.f32.gmra.mrb[0].mxu0 %v910
  %v1275 = vpop.f32.mrb[0].mxu0
  %v1276 = vadd.f32 %v744, %v1275
  %v1277 = vpop.f32.mrb[0].mxu0
  %1278 = vmatprep.mubr.f32.mxu0 0.0
  %1279 = vmatmul.mubr.f32.gmra.mrb[0].mxu0 %v913
  %v1280 = vpop.f32.mrb[0].mxu0
  %v1281 = vadd.f32 %v744, %v1280
  %v1282 = vpop.f32.mrb[0].mxu0
  %1283 = vmatprep.mubr.f32.mxu0 0.0
  %1284 = vmatmul.mubr.f32.gmra.mrb[0].mxu0 %v916
  %v1285 = vpop.f32.mrb[0].mxu0
  %v1286 = vadd.f32 %v744, %v1285
  %v1287 = vpop.f32.mrb[0].mxu0
  %1288 = vmatprep.mubr.f32.mxu0 0.0
  %1289 = vmatmul.mubr.f32.gmra.mrb[0].mxu0 %v919
  %v1290 = vpop.f32.mrb[0].mxu0
  %v1291 = vadd.f32 %v744, %v1290
  %v1292 = vpop.f32.mrb[0].mxu0
  %1293 = vmatprep.mubr.f32.mxu0 0.0
  %1294 = vmatmul.mubr.f32.gmra.mrb[0].mxu0 %v922
  %v1295 = vpop.f32.mrb[0].mxu0
  %v1296 = vadd.f32 %v744, %v1295
  %v1297 = vpop.f32.mrb[0].mxu0
  %1298 = vmatprep.mubr.f32.mxu0 0.0
  %1299 = vmatmul.mubr.f32.gmra.mrb[0].mxu0 %v925
  %v1300 = vpop.f32.mrb[0].mxu0
  %v1301 = vadd.f32 %v744, %v1300
  %v1302 = vpop.f32.mrb[0].mxu0
  %1303 = vmatprep.mubr.f32.mxu0 0.0
  %1304 = vmatmul.mubr.f32.gmra.mrb[0].mxu0 %v928
  %v1305 = vpop.f32.mrb[0].mxu0
  %v1306 = vadd.f32 %v744, %v1305
  %v1307 = vpop.f32.mrb[0].mxu0
  %1308 = vmatprep.mubr.f32.mxu0 0.0
  %1309 = vmatmul.mubr.f32.gmra.mrb[0].mxu0 %v931
  %v1310 = vpop.f32.mrb[0].mxu0
  %v1311 = vadd.f32 %v744, %v1310
  %v1312 = vpop.f32.mrb[0].mxu0
  %1313 = vmatprep.mubr.f32.mxu0 0.0
  %1314 = vmatmul.mubr.f32.gmra.mrb[0].mxu0 %v934
  %v1315 = vpop.f32.mrb[0].mxu0
  %v1316 = vadd.f32 %v744, %v1315
  %v1317 = vpop.f32.mrb[0].mxu0
  %1318 = vmatprep.mubr.f32.mxu0 0.0
  %1319 = vmatmul.mubr.f32.gmra.mrb[0].mxu0 %v937
  %v1320 = vpop.f32.mrb[0].mxu0
  %v1321 = vadd.f32 %v744, %v1320
  %v1322 = vpop.f32.mrb[0].mxu0
  %1323 = vdwg.mxu0
  %v1324 = vsel %vm95, %v1006, -inf
  %v1325 = vrot.slane %v1324, 4
  %v1326 = vmax.f32 %v1324, %v1325
  %v1327 = vrot.slane %v1326, 2
  %v1328 = vmax.f32 %v1326, %v1327
  %v1329 = vrot.slane %v1328, 1
  %v1330 = vmax.f32 %v1328, %v1329
  %v1331 = vsel %vm95, %v1011, -inf
  %v1332 = vrot.slane %v1331, 4
  %v1333 = vmax.f32 %v1331, %v1332
  %v1334 = vrot.slane %v1333, 2
  %v1335 = vmax.f32 %v1333, %v1334
  %v1336 = vrot.slane %v1335, 1
  %v1337 = vmax.f32 %v1335, %v1336
  %v1338 = vsel %vm95, %v1016, -inf
  %v1339 = vrot.slane %v1338, 4
  %v1340 = vmax.f32 %v1338, %v1339
  %v1341 = vrot.slane %v1340, 2
  %v1342 = vmax.f32 %v1340, %v1341
  %v1343 = vrot.slane %v1342, 1
  %v1344 = vmax.f32 %v1342, %v1343
  %v1345 = vsel %vm95, %v1021, -inf
  %v1346 = vrot.slane %v1345, 4
  %v1347 = vmax.f32 %v1345, %v1346
  %v1348 = vrot.slane %v1347, 2
  %v1349 = vmax.f32 %v1347, %v1348
  %v1350 = vrot.slane %v1349, 1
  %v1351 = vmax.f32 %v1349, %v1350
  %v1352 = vsel %vm95, %v1026, -inf
  %v1353 = vrot.slane %v1352, 4
  %v1354 = vmax.f32 %v1352, %v1353
  %v1355 = vrot.slane %v1354, 2
  %v1356 = vmax.f32 %v1354, %v1355
  %v1357 = vrot.slane %v1356, 1
  %v1358 = vmax.f32 %v1356, %v1357
  %v1359 = vsel %vm95, %v1031, -inf
  %v1360 = vrot.slane %v1359, 4
  %v1361 = vmax.f32 %v1359, %v1360
  %v1362 = vrot.slane %v1361, 2
  %v1363 = vmax.f32 %v1361, %v1362
  %v1364 = vrot.slane %v1363, 1
  %v1365 = vmax.f32 %v1363, %v1364
  %v1366 = vsel %vm95, %v1036, -inf
  %v1367 = vrot.slane %v1366, 4
  %v1368 = vmax.f32 %v1366, %v1367
  %v1369 = vrot.slane %v1368, 2
  %v1370 = vmax.f32 %v1368, %v1369
  %v1371 = vrot.slane %v1370, 1
  %v1372 = vmax.f32 %v1370, %v1371
  %v1373 = vsel %vm95, %v1041, -inf
  %v1374 = vrot.slane %v1373, 4
  %v1375 = vmax.f32 %v1373, %v1374
  %v1376 = vrot.slane %v1375, 2
  %v1377 = vmax.f32 %v1375, %v1376
  %v1378 = vrot.slane %v1377, 1
  %v1379 = vmax.f32 %v1377, %v1378
  %v1380 = vsel %vm95, %v1046, -inf
  %v1381 = vrot.slane %v1380, 4
  %v1382 = vmax.f32 %v1380, %v1381
  %v1383 = vrot.slane %v1382, 2
  %v1384 = vmax.f32 %v1382, %v1383
  %v1385 = vrot.slane %v1384, 1
  %v1386 = vmax.f32 %v1384, %v1385
  %v1387 = vsel %vm95, %v1051, -inf
  %v1388 = vrot.slane %v1387, 4
  %v1389 = vmax.f32 %v1387, %v1388
  %v1390 = vrot.slane %v1389, 2
  %v1391 = vmax.f32 %v1389, %v1390
  %v1392 = vrot.slane %v1391, 1
  %v1393 = vmax.f32 %v1391, %v1392
  %v1394 = vsel %vm95, %v1056, -inf
  %v1395 = vrot.slane %v1394, 4
  %v1396 = vmax.f32 %v1394, %v1395
  %v1397 = vrot.slane %v1396, 2
  %v1398 = vmax.f32 %v1396, %v1397
  %v1399 = vrot.slane %v1398, 1
  %v1400 = vmax.f32 %v1398, %v1399
  %v1401 = vsel %vm95, %v1061, -inf
  %v1402 = vrot.slane %v1401, 4
  %v1403 = vmax.f32 %v1401, %v1402
  %v1404 = vrot.slane %v1403, 2
  %v1405 = vmax.f32 %v1403, %v1404
  %v1406 = vrot.slane %v1405, 1
  %v1407 = vmax.f32 %v1405, %v1406
  %v1408 = vsel %vm95, %v1066, -inf
  %v1409 = vrot.slane %v1408, 4
  %v1410 = vmax.f32 %v1408, %v1409
  %v1411 = vrot.slane %v1410, 2
  %v1412 = vmax.f32 %v1410, %v1411
  %v1413 = vrot.slane %v1412, 1
  %v1414 = vmax.f32 %v1412, %v1413
  %v1415 = vsel %vm95, %v1071, -inf
  %v1416 = vrot.slane %v1415, 4
  %v1417 = vmax.f32 %v1415, %v1416
  %v1418 = vrot.slane %v1417, 2
  %v1419 = vmax.f32 %v1417, %v1418
  %v1420 = vrot.slane %v1419, 1
  %v1421 = vmax.f32 %v1419, %v1420
  %v1422 = vsel %vm95, %v1076, -inf
  %v1423 = vrot.slane %v1422, 4
  %v1424 = vmax.f32 %v1422, %v1423
  %v1425 = vrot.slane %v1424, 2
  %v1426 = vmax.f32 %v1424, %v1425
  %v1427 = vrot.slane %v1426, 1
  %v1428 = vmax.f32 %v1426, %v1427
  %v1429 = vsel %vm95, %v1081, -inf
  %v1430 = vrot.slane %v1429, 4
  %v1431 = vmax.f32 %v1429, %v1430
  %v1432 = vrot.slane %v1431, 2
  %v1433 = vmax.f32 %v1431, %v1432
  %v1434 = vrot.slane %v1433, 1
  %v1435 = vmax.f32 %v1433, %v1434
  %v1436 = vsel %vm95, %v1086, -inf
  %v1437 = vrot.slane %v1436, 4
  %v1438 = vmax.f32 %v1436, %v1437
  %v1439 = vrot.slane %v1438, 2
  %v1440 = vmax.f32 %v1438, %v1439
  %v1441 = vrot.slane %v1440, 1
  %v1442 = vmax.f32 %v1440, %v1441
  %v1443 = vsel %vm95, %v1091, -inf
  %v1444 = vrot.slane %v1443, 4
  %v1445 = vmax.f32 %v1443, %v1444
  %v1446 = vrot.slane %v1445, 2
  %v1447 = vmax.f32 %v1445, %v1446
  %v1448 = vrot.slane %v1447, 1
  %v1449 = vmax.f32 %v1447, %v1448
  %v1450 = vsel %vm95, %v1096, -inf
  %v1451 = vrot.slane %v1450, 4
  %v1452 = vmax.f32 %v1450, %v1451
  %v1453 = vrot.slane %v1452, 2
  %v1454 = vmax.f32 %v1452, %v1453
  %v1455 = vrot.slane %v1454, 1
  %v1456 = vmax.f32 %v1454, %v1455
  %v1457 = vsel %vm95, %v1101, -inf
  %v1458 = vrot.slane %v1457, 4
  %v1459 = vmax.f32 %v1457, %v1458
  %v1460 = vrot.slane %v1459, 2
  %v1461 = vmax.f32 %v1459, %v1460
  %v1462 = vrot.slane %v1461, 1
  %v1463 = vmax.f32 %v1461, %v1462
  %v1464 = vsel %vm95, %v1106, -inf
  %v1465 = vrot.slane %v1464, 4
  %v1466 = vmax.f32 %v1464, %v1465
  %v1467 = vrot.slane %v1466, 2
  %v1468 = vmax.f32 %v1466, %v1467
  %v1469 = vrot.slane %v1468, 1
  %v1470 = vmax.f32 %v1468, %v1469
  %v1471 = vsel %vm95, %v1111, -inf
  %v1472 = vrot.slane %v1471, 4
  %v1473 = vmax.f32 %v1471, %v1472
  %v1474 = vrot.slane %v1473, 2
  %v1475 = vmax.f32 %v1473, %v1474
  %v1476 = vrot.slane %v1475, 1
  %v1477 = vmax.f32 %v1475, %v1476
  %v1478 = vsel %vm95, %v1116, -inf
  %v1479 = vrot.slane %v1478, 4
  %v1480 = vmax.f32 %v1478, %v1479
  %v1481 = vrot.slane %v1480, 2
  %v1482 = vmax.f32 %v1480, %v1481
  %v1483 = vrot.slane %v1482, 1
  %v1484 = vmax.f32 %v1482, %v1483
  %v1485 = vsel %vm95, %v1121, -inf
  %v1486 = vrot.slane %v1485, 4
  %v1487 = vmax.f32 %v1485, %v1486
  %v1488 = vrot.slane %v1487, 2
  %v1489 = vmax.f32 %v1487, %v1488
  %v1490 = vrot.slane %v1489, 1
  %v1491 = vmax.f32 %v1489, %v1490
  %v1492 = vsel %vm95, %v1126, -inf
  %v1493 = vrot.slane %v1492, 4
  %v1494 = vmax.f32 %v1492, %v1493
  %v1495 = vrot.slane %v1494, 2
  %v1496 = vmax.f32 %v1494, %v1495
  %v1497 = vrot.slane %v1496, 1
  %v1498 = vmax.f32 %v1496, %v1497
  %v1499 = vsel %vm95, %v1131, -inf
  %v1500 = vrot.slane %v1499, 4
  %v1501 = vmax.f32 %v1499, %v1500
  %v1502 = vrot.slane %v1501, 2
  %v1503 = vmax.f32 %v1501, %v1502
  %v1504 = vrot.slane %v1503, 1
  %v1505 = vmax.f32 %v1503, %v1504
  %v1506 = vsel %vm95, %v1136, -inf
  %v1507 = vrot.slane %v1506, 4
  %v1508 = vmax.f32 %v1506, %v1507
  %v1509 = vrot.slane %v1508, 2
  %v1510 = vmax.f32 %v1508, %v1509
  %v1511 = vrot.slane %v1510, 1
  %v1512 = vmax.f32 %v1510, %v1511
  %v1513 = vsel %vm95, %v1141, -inf
  %v1514 = vrot.slane %v1513, 4
  %v1515 = vmax.f32 %v1513, %v1514
  %v1516 = vrot.slane %v1515, 2
  %v1517 = vmax.f32 %v1515, %v1516
  %v1518 = vrot.slane %v1517, 1
  %v1519 = vmax.f32 %v1517, %v1518
  %v1520 = vsel %vm95, %v1146, -inf
  %v1521 = vrot.slane %v1520, 4
  %v1522 = vmax.f32 %v1520, %v1521
  %v1523 = vrot.slane %v1522, 2
  %v1524 = vmax.f32 %v1522, %v1523
  %v1525 = vrot.slane %v1524, 1
  %v1526 = vmax.f32 %v1524, %v1525
  %v1527 = vsel %vm95, %v1151, -inf
  %v1528 = vrot.slane %v1527, 4
  %v1529 = vmax.f32 %v1527, %v1528
  %v1530 = vrot.slane %v1529, 2
  %v1531 = vmax.f32 %v1529, %v1530
  %v1532 = vrot.slane %v1531, 1
  %v1533 = vmax.f32 %v1531, %v1532
  %v1534 = vsel %vm95, %v1156, -inf
  %v1535 = vrot.slane %v1534, 4
  %v1536 = vmax.f32 %v1534, %v1535
  %v1537 = vrot.slane %v1536, 2
  %v1538 = vmax.f32 %v1536, %v1537
  %v1539 = vrot.slane %v1538, 1
  %v1540 = vmax.f32 %v1538, %v1539
  %v1541 = vsel %vm95, %v1161, -inf
  %v1542 = vrot.slane %v1541, 4
  %v1543 = vmax.f32 %v1541, %v1542
  %v1544 = vrot.slane %v1543, 2
  %v1545 = vmax.f32 %v1543, %v1544
  %v1546 = vrot.slane %v1545, 1
  %v1547 = vmax.f32 %v1545, %v1546
  %v1548 = vsel %vm95, %v1166, -inf
  %v1549 = vrot.slane %v1548, 4
  %v1550 = vmax.f32 %v1548, %v1549
  %v1551 = vrot.slane %v1550, 2
  %v1552 = vmax.f32 %v1550, %v1551
  %v1553 = vrot.slane %v1552, 1
  %v1554 = vmax.f32 %v1552, %v1553
  %v1555 = vsel %vm95, %v1171, -inf
  %v1556 = vrot.slane %v1555, 4
  %v1557 = vmax.f32 %v1555, %v1556
  %v1558 = vrot.slane %v1557, 2
  %v1559 = vmax.f32 %v1557, %v1558
  %v1560 = vrot.slane %v1559, 1
  %v1561 = vmax.f32 %v1559, %v1560
  %v1562 = vsel %vm95, %v1176, -inf
  %v1563 = vrot.slane %v1562, 4
  %v1564 = vmax.f32 %v1562, %v1563
  %v1565 = vrot.slane %v1564, 2
  %v1566 = vmax.f32 %v1564, %v1565
  %v1567 = vrot.slane %v1566, 1
  %v1568 = vmax.f32 %v1566, %v1567
  %v1569 = vsel %vm95, %v1181, -inf
  %v1570 = vrot.slane %v1569, 4
  %v1571 = vmax.f32 %v1569, %v1570
  %v1572 = vrot.slane %v1571, 2
  %v1573 = vmax.f32 %v1571, %v1572
  %v1574 = vrot.slane %v1573, 1
  %v1575 = vmax.f32 %v1573, %v1574
  %v1576 = vsel %vm95, %v1186, -inf
  %v1577 = vrot.slane %v1576, 4
  %v1578 = vmax.f32 %v1576, %v1577
  %v1579 = vrot.slane %v1578, 2
  %v1580 = vmax.f32 %v1578, %v1579
  %v1581 = vrot.slane %v1580, 1
  %v1582 = vmax.f32 %v1580, %v1581
  %v1583 = vsel %vm95, %v1191, -inf
  %v1584 = vrot.slane %v1583, 4
  %v1585 = vmax.f32 %v1583, %v1584
  %v1586 = vrot.slane %v1585, 2
  %v1587 = vmax.f32 %v1585, %v1586
  %v1588 = vrot.slane %v1587, 1
  %v1589 = vmax.f32 %v1587, %v1588
  %v1590 = vsel %vm95, %v1196, -inf
  %v1591 = vrot.slane %v1590, 4
  %v1592 = vmax.f32 %v1590, %v1591
  %v1593 = vrot.slane %v1592, 2
  %v1594 = vmax.f32 %v1592, %v1593
  %v1595 = vrot.slane %v1594, 1
  %v1596 = vmax.f32 %v1594, %v1595
  %v1597 = vsel %vm95, %v1201, -inf
  %v1598 = vrot.slane %v1597, 4
  %v1599 = vmax.f32 %v1597, %v1598
  %v1600 = vrot.slane %v1599, 2
  %v1601 = vmax.f32 %v1599, %v1600
  %v1602 = vrot.slane %v1601, 1
  %v1603 = vmax.f32 %v1601, %v1602
  %v1604 = vsel %vm95, %v1206, -inf
  %v1605 = vrot.slane %v1604, 4
  %v1606 = vmax.f32 %v1604, %v1605
  %v1607 = vrot.slane %v1606, 2
  %v1608 = vmax.f32 %v1606, %v1607
  %v1609 = vrot.slane %v1608, 1
  %v1610 = vmax.f32 %v1608, %v1609
  %v1611 = vsel %vm95, %v1211, -inf
  %v1612 = vrot.slane %v1611, 4
  %v1613 = vmax.f32 %v1611, %v1612
  %v1614 = vrot.slane %v1613, 2
  %v1615 = vmax.f32 %v1613, %v1614
  %v1616 = vrot.slane %v1615, 1
  %v1617 = vmax.f32 %v1615, %v1616
  %v1618 = vsel %vm95, %v1216, -inf
  %v1619 = vrot.slane %v1618, 4
  %v1620 = vmax.f32 %v1618, %v1619
  %v1621 = vrot.slane %v1620, 2
  %v1622 = vmax.f32 %v1620, %v1621
  %v1623 = vrot.slane %v1622, 1
  %v1624 = vmax.f32 %v1622, %v1623
  %v1625 = vsel %vm95, %v1221, -inf
  %v1626 = vrot.slane %v1625, 4
  %v1627 = vmax.f32 %v1625, %v1626
  %v1628 = vrot.slane %v1627, 2
  %v1629 = vmax.f32 %v1627, %v1628
  %v1630 = vrot.slane %v1629, 1
  %v1631 = vmax.f32 %v1629, %v1630
  %v1632 = vsel %vm95, %v1226, -inf
  %v1633 = vrot.slane %v1632, 4
  %v1634 = vmax.f32 %v1632, %v1633
  %v1635 = vrot.slane %v1634, 2
  %v1636 = vmax.f32 %v1634, %v1635
  %v1637 = vrot.slane %v1636, 1
  %v1638 = vmax.f32 %v1636, %v1637
  %v1639 = vsel %vm95, %v1231, -inf
  %v1640 = vrot.slane %v1639, 4
  %v1641 = vmax.f32 %v1639, %v1640
  %v1642 = vrot.slane %v1641, 2
  %v1643 = vmax.f32 %v1641, %v1642
  %v1644 = vrot.slane %v1643, 1
  %v1645 = vmax.f32 %v1643, %v1644
  %v1646 = vsel %vm95, %v1236, -inf
  %v1647 = vrot.slane %v1646, 4
  %v1648 = vmax.f32 %v1646, %v1647
  %v1649 = vrot.slane %v1648, 2
  %v1650 = vmax.f32 %v1648, %v1649
  %v1651 = vrot.slane %v1650, 1
  %v1652 = vmax.f32 %v1650, %v1651
  %v1653 = vsel %vm95, %v1241, -inf
  %v1654 = vrot.slane %v1653, 4
  %v1655 = vmax.f32 %v1653, %v1654
  %v1656 = vrot.slane %v1655, 2
  %v1657 = vmax.f32 %v1655, %v1656
  %v1658 = vrot.slane %v1657, 1
  %v1659 = vmax.f32 %v1657, %v1658
  %v1660 = vsel %vm95, %v1246, -inf
  %v1661 = vrot.slane %v1660, 4
  %v1662 = vmax.f32 %v1660, %v1661
  %v1663 = vrot.slane %v1662, 2
  %v1664 = vmax.f32 %v1662, %v1663
  %v1665 = vrot.slane %v1664, 1
  %v1666 = vmax.f32 %v1664, %v1665
  %v1667 = vsel %vm95, %v1251, -inf
  %v1668 = vrot.slane %v1667, 4
  %v1669 = vmax.f32 %v1667, %v1668
  %v1670 = vrot.slane %v1669, 2
  %v1671 = vmax.f32 %v1669, %v1670
  %v1672 = vrot.slane %v1671, 1
  %v1673 = vmax.f32 %v1671, %v1672
  %v1674 = vsel %vm95, %v1256, -inf
  %v1675 = vrot.slane %v1674, 4
  %v1676 = vmax.f32 %v1674, %v1675
  %v1677 = vrot.slane %v1676, 2
  %v1678 = vmax.f32 %v1676, %v1677
  %v1679 = vrot.slane %v1678, 1
  %v1680 = vmax.f32 %v1678, %v1679
  %v1681 = vsel %vm95, %v1261, -inf
  %v1682 = vrot.slane %v1681, 4
  %v1683 = vmax.f32 %v1681, %v1682
  %v1684 = vrot.slane %v1683, 2
  %v1685 = vmax.f32 %v1683, %v1684
  %v1686 = vrot.slane %v1685, 1
  %v1687 = vmax.f32 %v1685, %v1686
  %v1688 = vsel %vm95, %v1266, -inf
  %v1689 = vrot.slane %v1688, 4
  %v1690 = vmax.f32 %v1688, %v1689
  %v1691 = vrot.slane %v1690, 2
  %v1692 = vmax.f32 %v1690, %v1691
  %v1693 = vrot.slane %v1692, 1
  %v1694 = vmax.f32 %v1692, %v1693
  %v1695 = vsel %vm95, %v1271, -inf
  %v1696 = vrot.slane %v1695, 4
  %v1697 = vmax.f32 %v1695, %v1696
  %v1698 = vrot.slane %v1697, 2
  %v1699 = vmax.f32 %v1697, %v1698
  %v1700 = vrot.slane %v1699, 1
  %v1701 = vmax.f32 %v1699, %v1700
  %v1702 = vsel %vm95, %v1276, -inf
  %v1703 = vrot.slane %v1702, 4
  %v1704 = vmax.f32 %v1702, %v1703
  %v1705 = vrot.slane %v1704, 2
  %v1706 = vmax.f32 %v1704, %v1705
  %v1707 = vrot.slane %v1706, 1
  %v1708 = vmax.f32 %v1706, %v1707
  %v1709 = vsel %vm95, %v1281, -inf
  %v1710 = vrot.slane %v1709, 4
  %v1711 = vmax.f32 %v1709, %v1710
  %v1712 = vrot.slane %v1711, 2
  %v1713 = vmax.f32 %v1711, %v1712
  %v1714 = vrot.slane %v1713, 1
  %v1715 = vmax.f32 %v1713, %v1714
  %v1716 = vsel %vm95, %v1286, -inf
  %v1717 = vrot.slane %v1716, 4
  %v1718 = vmax.f32 %v1716, %v1717
  %v1719 = vrot.slane %v1718, 2
  %v1720 = vmax.f32 %v1718, %v1719
  %v1721 = vrot.slane %v1720, 1
  %v1722 = vmax.f32 %v1720, %v1721
  %v1723 = vsel %vm95, %v1291, -inf
  %v1724 = vrot.slane %v1723, 4
  %v1725 = vmax.f32 %v1723, %v1724
  %v1726 = vrot.slane %v1725, 2
  %v1727 = vmax.f32 %v1725, %v1726
  %v1728 = vrot.slane %v1727, 1
  %v1729 = vmax.f32 %v1727, %v1728
  %v1730 = vsel %vm95, %v1296, -inf
  %v1731 = vrot.slane %v1730, 4
  %v1732 = vmax.f32 %v1730, %v1731
  %v1733 = vrot.slane %v1732, 2
  %v1734 = vmax.f32 %v1732, %v1733
  %v1735 = vrot.slane %v1734, 1
  %v1736 = vmax.f32 %v1734, %v1735
  %v1737 = vsel %vm95, %v1301, -inf
  %v1738 = vrot.slane %v1737, 4
  %v1739 = vmax.f32 %v1737, %v1738
  %v1740 = vrot.slane %v1739, 2
  %v1741 = vmax.f32 %v1739, %v1740
  %v1742 = vrot.slane %v1741, 1
  %v1743 = vmax.f32 %v1741, %v1742
  %v1744 = vsel %vm95, %v1306, -inf
  %v1745 = vrot.slane %v1744, 4
  %v1746 = vmax.f32 %v1744, %v1745
  %v1747 = vrot.slane %v1746, 2
  %v1748 = vmax.f32 %v1746, %v1747
  %v1749 = vrot.slane %v1748, 1
  %v1750 = vmax.f32 %v1748, %v1749
  %v1751 = vsel %vm95, %v1311, -inf
  %v1752 = vrot.slane %v1751, 4
  %v1753 = vmax.f32 %v1751, %v1752
  %v1754 = vrot.slane %v1753, 2
  %v1755 = vmax.f32 %v1753, %v1754
  %v1756 = vrot.slane %v1755, 1
  %v1757 = vmax.f32 %v1755, %v1756
  %v1758 = vsel %vm95, %v1316, -inf
  %v1759 = vrot.slane %v1758, 4
  %v1760 = vmax.f32 %v1758, %v1759
  %v1761 = vrot.slane %v1760, 2
  %v1762 = vmax.f32 %v1760, %v1761
  %v1763 = vrot.slane %v1762, 1
  %v1764 = vmax.f32 %v1762, %v1763
  %v1765 = vsel %vm95, %v1321, -inf
  %v1766 = vrot.slane %v1765, 4
  %v1767 = vmax.f32 %v1765, %v1766
  %v1768 = vrot.slane %v1767, 2
  %v1769 = vmax.f32 %v1767, %v1768
  %v1770 = vrot.slane %v1769, 1
  %v1771 = vmax.f32 %v1769, %v1770
  %v1772 = vsub.f32 %v1006, %v1330
  %v1773 = vsub.f32 %v1011, %v1337
  %v1774 = vsub.f32 %v1016, %v1344
  %v1775 = vsub.f32 %v1021, %v1351
  %v1776 = vsub.f32 %v1026, %v1358
  %v1777 = vsub.f32 %v1031, %v1365
  %v1778 = vsub.f32 %v1036, %v1372
  %v1779 = vsub.f32 %v1041, %v1379
  %v1780 = vsub.f32 %v1046, %v1386
  %v1781 = vsub.f32 %v1051, %v1393
  %v1782 = vsub.f32 %v1056, %v1400
  %v1783 = vsub.f32 %v1061, %v1407
  %v1784 = vsub.f32 %v1066, %v1414
  %v1785 = vsub.f32 %v1071, %v1421
  %v1786 = vsub.f32 %v1076, %v1428
  %v1787 = vsub.f32 %v1081, %v1435
  %v1788 = vsub.f32 %v1086, %v1442
  %v1789 = vsub.f32 %v1091, %v1449
  %v1790 = vsub.f32 %v1096, %v1456
  %v1791 = vsub.f32 %v1101, %v1463
  %v1792 = vsub.f32 %v1106, %v1470
  %v1793 = vsub.f32 %v1111, %v1477
  %v1794 = vsub.f32 %v1116, %v1484
  %v1795 = vsub.f32 %v1121, %v1491
  %v1796 = vsub.f32 %v1126, %v1498
  %v1797 = vsub.f32 %v1131, %v1505
  %v1798 = vsub.f32 %v1136, %v1512
  %v1799 = vsub.f32 %v1141, %v1519
  %v1800 = vsub.f32 %v1146, %v1526
  %v1801 = vsub.f32 %v1151, %v1533
  %v1802 = vsub.f32 %v1156, %v1540
  %v1803 = vsub.f32 %v1161, %v1547
  %v1804 = vsub.f32 %v1166, %v1554
  %v1805 = vsub.f32 %v1171, %v1561
  %v1806 = vsub.f32 %v1176, %v1568
  %v1807 = vsub.f32 %v1181, %v1575
  %v1808 = vsub.f32 %v1186, %v1582
  %v1809 = vsub.f32 %v1191, %v1589
  %v1810 = vsub.f32 %v1196, %v1596
  %v1811 = vsub.f32 %v1201, %v1603
  %v1812 = vsub.f32 %v1206, %v1610
  %v1813 = vsub.f32 %v1211, %v1617
  %v1814 = vsub.f32 %v1216, %v1624
  %v1815 = vsub.f32 %v1221, %v1631
  %v1816 = vsub.f32 %v1226, %v1638
  %v1817 = vsub.f32 %v1231, %v1645
  %v1818 = vsub.f32 %v1236, %v1652
  %v1819 = vsub.f32 %v1241, %v1659
  %v1820 = vsub.f32 %v1246, %v1666
  %v1821 = vsub.f32 %v1251, %v1673
  %v1822 = vsub.f32 %v1256, %v1680
  %v1823 = vsub.f32 %v1261, %v1687
  %v1824 = vsub.f32 %v1266, %v1694
  %v1825 = vsub.f32 %v1271, %v1701
  %v1826 = vsub.f32 %v1276, %v1708
  %v1827 = vsub.f32 %v1281, %v1715
  %v1828 = vsub.f32 %v1286, %v1722
  %v1829 = vsub.f32 %v1291, %v1729
  %v1830 = vsub.f32 %v1296, %v1736
  %v1831 = vsub.f32 %v1301, %v1743
  %v1832 = vsub.f32 %v1306, %v1750
  %v1833 = vsub.f32 %v1311, %v1757
  %v1834 = vsub.f32 %v1316, %v1764
  %v1835 = vsub.f32 %v1321, %v1771
  %v1836 = vmul.f32 %v1772, 1.442695
  %v1837 = vpow.pop %v1836
  %v1838 = vmul.f32 %v1773, 1.442695
  %v1839 = vpow.pop %v1838
  %v1840 = vmul.f32 %v1774, 1.442695
  %v1841 = vpow.pop %v1840
  %v1842 = vmul.f32 %v1775, 1.442695
  %v1843 = vpow.pop %v1842
  %v1844 = vmul.f32 %v1776, 1.442695
  %v1845 = vpow.pop %v1844
  %v1846 = vmul.f32 %v1777, 1.442695
  %v1847 = vpow.pop %v1846
  %v1848 = vmul.f32 %v1778, 1.442695
  %v1849 = vpow.pop %v1848
  %v1850 = vmul.f32 %v1779, 1.442695
  %v1851 = vpow.pop %v1850
  %v1852 = vmul.f32 %v1780, 1.442695
  %v1853 = vpow.pop %v1852
  %v1854 = vmul.f32 %v1781, 1.442695
  %v1855 = vpow.pop %v1854
  %v1856 = vmul.f32 %v1782, 1.442695
  %v1857 = vpow.pop %v1856
  %v1858 = vmul.f32 %v1783, 1.442695
  %v1859 = vpow.pop %v1858
  %v1860 = vmul.f32 %v1784, 1.442695
  %v1861 = vpow.pop %v1860
  %v1862 = vmul.f32 %v1785, 1.442695
  %v1863 = vpow.pop %v1862
  %v1864 = vmul.f32 %v1786, 1.442695
  %v1865 = vpow.pop %v1864
  %v1866 = vmul.f32 %v1787, 1.442695
  %v1867 = vpow.pop %v1866
  %v1868 = vmul.f32 %v1788, 1.442695
  %v1869 = vpow.pop %v1868
  %v1870 = vmul.f32 %v1789, 1.442695
  %v1871 = vpow.pop %v1870
  %v1872 = vmul.f32 %v1790, 1.442695
  %v1873 = vpow.pop %v1872
  %v1874 = vmul.f32 %v1791, 1.442695
  %v1875 = vpow.pop %v1874
  %v1876 = vmul.f32 %v1792, 1.442695
  %v1877 = vpow.pop %v1876
  %v1878 = vmul.f32 %v1793, 1.442695
  %v1879 = vpow.pop %v1878
  %v1880 = vmul.f32 %v1794, 1.442695
  %v1881 = vpow.pop %v1880
  %v1882 = vmul.f32 %v1795, 1.442695
  %v1883 = vpow.pop %v1882
  %v1884 = vmul.f32 %v1796, 1.442695
  %v1885 = vpow.pop %v1884
  %v1886 = vmul.f32 %v1797, 1.442695
  %v1887 = vpow.pop %v1886
  %v1888 = vmul.f32 %v1798, 1.442695
  %v1889 = vpow.pop %v1888
  %v1890 = vmul.f32 %v1799, 1.442695
  %v1891 = vpow.pop %v1890
  %v1892 = vmul.f32 %v1800, 1.442695
  %v1893 = vpow.pop %v1892
  %v1894 = vmul.f32 %v1801, 1.442695
  %v1895 = vpow.pop %v1894
  %v1896 = vmul.f32 %v1802, 1.442695
  %v1897 = vpow.pop %v1896
  %v1898 = vmul.f32 %v1803, 1.442695
  %v1899 = vpow.pop %v1898
  %v1900 = vmul.f32 %v1804, 1.442695
  %v1901 = vpow.pop %v1900
  %v1902 = vmul.f32 %v1805, 1.442695
  %v1903 = vpow.pop %v1902
  %v1904 = vmul.f32 %v1806, 1.442695
  %v1905 = vpow.pop %v1904
  %v1906 = vmul.f32 %v1807, 1.442695
  %v1907 = vpow.pop %v1906
  %v1908 = vmul.f32 %v1808, 1.442695
  %v1909 = vpow.pop %v1908
  %v1910 = vmul.f32 %v1809, 1.442695
  %v1911 = vpow.pop %v1910
  %v1912 = vmul.f32 %v1810, 1.442695
  %v1913 = vpow.pop %v1912
  %v1914 = vmul.f32 %v1811, 1.442695
  %v1915 = vpow.pop %v1914
  %v1916 = vmul.f32 %v1812, 1.442695
  %v1917 = vpow.pop %v1916
  %v1918 = vmul.f32 %v1813, 1.442695
  %v1919 = vpow.pop %v1918
  %v1920 = vmul.f32 %v1814, 1.442695
  %v1921 = vpow.pop %v1920
  %v1922 = vmul.f32 %v1815, 1.442695
  %v1923 = vpow.pop %v1922
  %v1924 = vmul.f32 %v1816, 1.442695
  %v1925 = vpow.pop %v1924
  %v1926 = vmul.f32 %v1817, 1.442695
  %v1927 = vpow.pop %v1926
  %v1928 = vmul.f32 %v1818, 1.442695
  %v1929 = vpow.pop %v1928
  %v1930 = vmul.f32 %v1819, 1.442695
  %v1931 = vpow.pop %v1930
  %v1932 = vmul.f32 %v1820, 1.442695
  %v1933 = vpow.pop %v1932
  %v1934 = vmul.f32 %v1821, 1.442695
  %v1935 = vpow.pop %v1934
  %v1936 = vmul.f32 %v1822, 1.442695
  %v1937 = vpow.pop %v1936
  %v1938 = vmul.f32 %v1823, 1.442695
  %v1939 = vpow.pop %v1938
  %v1940 = vmul.f32 %v1824, 1.442695
  %v1941 = vpow.pop %v1940
  %v1942 = vmul.f32 %v1825, 1.442695
  %v1943 = vpow.pop %v1942
  %v1944 = vmul.f32 %v1826, 1.442695
  %v1945 = vpow.pop %v1944
  %v1946 = vmul.f32 %v1827, 1.442695
  %v1947 = vpow.pop %v1946
  %v1948 = vmul.f32 %v1828, 1.442695
  %v1949 = vpow.pop %v1948
  %v1950 = vmul.f32 %v1829, 1.442695
  %v1951 = vpow.pop %v1950
  %v1952 = vmul.f32 %v1830, 1.442695
  %v1953 = vpow.pop %v1952
  %v1954 = vmul.f32 %v1831, 1.442695
  %v1955 = vpow.pop %v1954
  %v1956 = vmul.f32 %v1832, 1.442695
  %v1957 = vpow.pop %v1956
  %v1958 = vmul.f32 %v1833, 1.442695
  %v1959 = vpow.pop %v1958
  %v1960 = vmul.f32 %v1834, 1.442695
  %v1961 = vpow.pop %v1960
  %v1962 = vmul.f32 %v1835, 1.442695
  %v1963 = vpow.pop %v1962
  %v1964 = vsel %vm95, %v1837, 0.0
  %v1965 = vrot.slane %v1964, 4
  %v1966 = vadd.f32 %v1964, %v1965
  %v1967 = vrot.slane %v1966, 2
  %v1968 = vadd.f32 %v1966, %v1967
  %v1969 = vrot.slane %v1968, 1
  %v1970 = vadd.f32 %v1968, %v1969
  %v1971 = vsel %vm95, %v1839, 0.0
  %v1972 = vrot.slane %v1971, 4
  %v1973 = vadd.f32 %v1971, %v1972
  %v1974 = vrot.slane %v1973, 2
  %v1975 = vadd.f32 %v1973, %v1974
  %v1976 = vrot.slane %v1975, 1
  %v1977 = vadd.f32 %v1975, %v1976
  %v1978 = vsel %vm95, %v1841, 0.0
  %v1979 = vrot.slane %v1978, 4
  %v1980 = vadd.f32 %v1978, %v1979
  %v1981 = vrot.slane %v1980, 2
  %v1982 = vadd.f32 %v1980, %v1981
  %v1983 = vrot.slane %v1982, 1
  %v1984 = vadd.f32 %v1982, %v1983
  %v1985 = vsel %vm95, %v1843, 0.0
  %v1986 = vrot.slane %v1985, 4
  %v1987 = vadd.f32 %v1985, %v1986
  %v1988 = vrot.slane %v1987, 2
  %v1989 = vadd.f32 %v1987, %v1988
  %v1990 = vrot.slane %v1989, 1
  %v1991 = vadd.f32 %v1989, %v1990
  %v1992 = vsel %vm95, %v1845, 0.0
  %v1993 = vrot.slane %v1992, 4
  %v1994 = vadd.f32 %v1992, %v1993
  %v1995 = vrot.slane %v1994, 2
  %v1996 = vadd.f32 %v1994, %v1995
  %v1997 = vrot.slane %v1996, 1
  %v1998 = vadd.f32 %v1996, %v1997
  %v1999 = vsel %vm95, %v1847, 0.0
  %v2000 = vrot.slane %v1999, 4
  %v2001 = vadd.f32 %v1999, %v2000
  %v2002 = vrot.slane %v2001, 2
  %v2003 = vadd.f32 %v2001, %v2002
  %v2004 = vrot.slane %v2003, 1
  %v2005 = vadd.f32 %v2003, %v2004
  %v2006 = vsel %vm95, %v1849, 0.0
  %v2007 = vrot.slane %v2006, 4
  %v2008 = vadd.f32 %v2006, %v2007
  %v2009 = vrot.slane %v2008, 2
  %v2010 = vadd.f32 %v2008, %v2009
  %v2011 = vrot.slane %v2010, 1
  %v2012 = vadd.f32 %v2010, %v2011
  %v2013 = vsel %vm95, %v1851, 0.0
  %v2014 = vrot.slane %v2013, 4
  %v2015 = vadd.f32 %v2013, %v2014
  %v2016 = vrot.slane %v2015, 2
  %v2017 = vadd.f32 %v2015, %v2016
  %v2018 = vrot.slane %v2017, 1
  %v2019 = vadd.f32 %v2017, %v2018
  %v2020 = vsel %vm95, %v1853, 0.0
  %v2021 = vrot.slane %v2020, 4
  %v2022 = vadd.f32 %v2020, %v2021
  %v2023 = vrot.slane %v2022, 2
  %v2024 = vadd.f32 %v2022, %v2023
  %v2025 = vrot.slane %v2024, 1
  %v2026 = vadd.f32 %v2024, %v2025
  %v2027 = vsel %vm95, %v1855, 0.0
  %v2028 = vrot.slane %v2027, 4
  %v2029 = vadd.f32 %v2027, %v2028
  %v2030 = vrot.slane %v2029, 2
  %v2031 = vadd.f32 %v2029, %v2030
  %v2032 = vrot.slane %v2031, 1
  %v2033 = vadd.f32 %v2031, %v2032
  %v2034 = vsel %vm95, %v1857, 0.0
  %v2035 = vrot.slane %v2034, 4
  %v2036 = vadd.f32 %v2034, %v2035
  %v2037 = vrot.slane %v2036, 2
  %v2038 = vadd.f32 %v2036, %v2037
  %v2039 = vrot.slane %v2038, 1
  %v2040 = vadd.f32 %v2038, %v2039
  %v2041 = vsel %vm95, %v1859, 0.0
  %v2042 = vrot.slane %v2041, 4
  %v2043 = vadd.f32 %v2041, %v2042
  %v2044 = vrot.slane %v2043, 2
  %v2045 = vadd.f32 %v2043, %v2044
  %v2046 = vrot.slane %v2045, 1
  %v2047 = vadd.f32 %v2045, %v2046
  %v2048 = vsel %vm95, %v1861, 0.0
  %v2049 = vrot.slane %v2048, 4
  %v2050 = vadd.f32 %v2048, %v2049
  %v2051 = vrot.slane %v2050, 2
  %v2052 = vadd.f32 %v2050, %v2051
  %v2053 = vrot.slane %v2052, 1
  %v2054 = vadd.f32 %v2052, %v2053
  %v2055 = vsel %vm95, %v1863, 0.0
  %v2056 = vrot.slane %v2055, 4
  %v2057 = vadd.f32 %v2055, %v2056
  %v2058 = vrot.slane %v2057, 2
  %v2059 = vadd.f32 %v2057, %v2058
  %v2060 = vrot.slane %v2059, 1
  %v2061 = vadd.f32 %v2059, %v2060
  %v2062 = vsel %vm95, %v1865, 0.0
  %v2063 = vrot.slane %v2062, 4
  %v2064 = vadd.f32 %v2062, %v2063
  %v2065 = vrot.slane %v2064, 2
  %v2066 = vadd.f32 %v2064, %v2065
  %v2067 = vrot.slane %v2066, 1
  %v2068 = vadd.f32 %v2066, %v2067
  %v2069 = vsel %vm95, %v1867, 0.0
  %v2070 = vrot.slane %v2069, 4
  %v2071 = vadd.f32 %v2069, %v2070
  %v2072 = vrot.slane %v2071, 2
  %v2073 = vadd.f32 %v2071, %v2072
  %v2074 = vrot.slane %v2073, 1
  %v2075 = vadd.f32 %v2073, %v2074
  %v2076 = vsel %vm95, %v1869, 0.0
  %v2077 = vrot.slane %v2076, 4
  %v2078 = vadd.f32 %v2076, %v2077
  %v2079 = vrot.slane %v2078, 2
  %v2080 = vadd.f32 %v2078, %v2079
  %v2081 = vrot.slane %v2080, 1
  %v2082 = vadd.f32 %v2080, %v2081
  %v2083 = vsel %vm95, %v1871, 0.0
  %v2084 = vrot.slane %v2083, 4
  %v2085 = vadd.f32 %v2083, %v2084
  %v2086 = vrot.slane %v2085, 2
  %v2087 = vadd.f32 %v2085, %v2086
  %v2088 = vrot.slane %v2087, 1
  %v2089 = vadd.f32 %v2087, %v2088
  %v2090 = vsel %vm95, %v1873, 0.0
  %v2091 = vrot.slane %v2090, 4
  %v2092 = vadd.f32 %v2090, %v2091
  %v2093 = vrot.slane %v2092, 2
  %v2094 = vadd.f32 %v2092, %v2093
  %v2095 = vrot.slane %v2094, 1
  %v2096 = vadd.f32 %v2094, %v2095
  %v2097 = vsel %vm95, %v1875, 0.0
  %v2098 = vrot.slane %v2097, 4
  %v2099 = vadd.f32 %v2097, %v2098
  %v2100 = vrot.slane %v2099, 2
  %v2101 = vadd.f32 %v2099, %v2100
  %v2102 = vrot.slane %v2101, 1
  %v2103 = vadd.f32 %v2101, %v2102
  %v2104 = vsel %vm95, %v1877, 0.0
  %v2105 = vrot.slane %v2104, 4
  %v2106 = vadd.f32 %v2104, %v2105
  %v2107 = vrot.slane %v2106, 2
  %v2108 = vadd.f32 %v2106, %v2107
  %v2109 = vrot.slane %v2108, 1
  %v2110 = vadd.f32 %v2108, %v2109
  %v2111 = vsel %vm95, %v1879, 0.0
  %v2112 = vrot.slane %v2111, 4
  %v2113 = vadd.f32 %v2111, %v2112
  %v2114 = vrot.slane %v2113, 2
  %v2115 = vadd.f32 %v2113, %v2114
  %v2116 = vrot.slane %v2115, 1
  %v2117 = vadd.f32 %v2115, %v2116
  %v2118 = vsel %vm95, %v1881, 0.0
  %v2119 = vrot.slane %v2118, 4
  %v2120 = vadd.f32 %v2118, %v2119
  %v2121 = vrot.slane %v2120, 2
  %v2122 = vadd.f32 %v2120, %v2121
  %v2123 = vrot.slane %v2122, 1
  %v2124 = vadd.f32 %v2122, %v2123
  %v2125 = vsel %vm95, %v1883, 0.0
  %v2126 = vrot.slane %v2125, 4
  %v2127 = vadd.f32 %v2125, %v2126
  %v2128 = vrot.slane %v2127, 2
  %v2129 = vadd.f32 %v2127, %v2128
  %v2130 = vrot.slane %v2129, 1
  %v2131 = vadd.f32 %v2129, %v2130
  %v2132 = vsel %vm95, %v1885, 0.0
  %v2133 = vrot.slane %v2132, 4
  %v2134 = vadd.f32 %v2132, %v2133
  %v2135 = vrot.slane %v2134, 2
  %v2136 = vadd.f32 %v2134, %v2135
  %v2137 = vrot.slane %v2136, 1
  %v2138 = vadd.f32 %v2136, %v2137
  %v2139 = vsel %vm95, %v1887, 0.0
  %v2140 = vrot.slane %v2139, 4
  %v2141 = vadd.f32 %v2139, %v2140
  %v2142 = vrot.slane %v2141, 2
  %v2143 = vadd.f32 %v2141, %v2142
  %v2144 = vrot.slane %v2143, 1
  %v2145 = vadd.f32 %v2143, %v2144
  %v2146 = vsel %vm95, %v1889, 0.0
  %v2147 = vrot.slane %v2146, 4
  %v2148 = vadd.f32 %v2146, %v2147
  %v2149 = vrot.slane %v2148, 2
  %v2150 = vadd.f32 %v2148, %v2149
  %v2151 = vrot.slane %v2150, 1
  %v2152 = vadd.f32 %v2150, %v2151
  %v2153 = vsel %vm95, %v1891, 0.0
  %v2154 = vrot.slane %v2153, 4
  %v2155 = vadd.f32 %v2153, %v2154
  %v2156 = vrot.slane %v2155, 2
  %v2157 = vadd.f32 %v2155, %v2156
  %v2158 = vrot.slane %v2157, 1
  %v2159 = vadd.f32 %v2157, %v2158
  %v2160 = vsel %vm95, %v1893, 0.0
  %v2161 = vrot.slane %v2160, 4
  %v2162 = vadd.f32 %v2160, %v2161
  %v2163 = vrot.slane %v2162, 2
  %v2164 = vadd.f32 %v2162, %v2163
  %v2165 = vrot.slane %v2164, 1
  %v2166 = vadd.f32 %v2164, %v2165
  %v2167 = vsel %vm95, %v1895, 0.0
  %v2168 = vrot.slane %v2167, 4
  %v2169 = vadd.f32 %v2167, %v2168
  %v2170 = vrot.slane %v2169, 2
  %v2171 = vadd.f32 %v2169, %v2170
  %v2172 = vrot.slane %v2171, 1
  %v2173 = vadd.f32 %v2171, %v2172
  %v2174 = vsel %vm95, %v1897, 0.0
  %v2175 = vrot.slane %v2174, 4
  %v2176 = vadd.f32 %v2174, %v2175
  %v2177 = vrot.slane %v2176, 2
  %v2178 = vadd.f32 %v2176, %v2177
  %v2179 = vrot.slane %v2178, 1
  %v2180 = vadd.f32 %v2178, %v2179
  %v2181 = vsel %vm95, %v1899, 0.0
  %v2182 = vrot.slane %v2181, 4
  %v2183 = vadd.f32 %v2181, %v2182
  %v2184 = vrot.slane %v2183, 2
  %v2185 = vadd.f32 %v2183, %v2184
  %v2186 = vrot.slane %v2185, 1
  %v2187 = vadd.f32 %v2185, %v2186
  %v2188 = vsel %vm95, %v1901, 0.0
  %v2189 = vrot.slane %v2188, 4
  %v2190 = vadd.f32 %v2188, %v2189
  %v2191 = vrot.slane %v2190, 2
  %v2192 = vadd.f32 %v2190, %v2191
  %v2193 = vrot.slane %v2192, 1
  %v2194 = vadd.f32 %v2192, %v2193
  %v2195 = vsel %vm95, %v1903, 0.0
  %v2196 = vrot.slane %v2195, 4
  %v2197 = vadd.f32 %v2195, %v2196
  %v2198 = vrot.slane %v2197, 2
  %v2199 = vadd.f32 %v2197, %v2198
  %v2200 = vrot.slane %v2199, 1
  %v2201 = vadd.f32 %v2199, %v2200
  %v2202 = vsel %vm95, %v1905, 0.0
  %v2203 = vrot.slane %v2202, 4
  %v2204 = vadd.f32 %v2202, %v2203
  %v2205 = vrot.slane %v2204, 2
  %v2206 = vadd.f32 %v2204, %v2205
  %v2207 = vrot.slane %v2206, 1
  %v2208 = vadd.f32 %v2206, %v2207
  %v2209 = vsel %vm95, %v1907, 0.0
  %v2210 = vrot.slane %v2209, 4
  %v2211 = vadd.f32 %v2209, %v2210
  %v2212 = vrot.slane %v2211, 2
  %v2213 = vadd.f32 %v2211, %v2212
  %v2214 = vrot.slane %v2213, 1
  %v2215 = vadd.f32 %v2213, %v2214
  %v2216 = vsel %vm95, %v1909, 0.0
  %v2217 = vrot.slane %v2216, 4
  %v2218 = vadd.f32 %v2216, %v2217
  %v2219 = vrot.slane %v2218, 2
  %v2220 = vadd.f32 %v2218, %v2219
  %v2221 = vrot.slane %v2220, 1
  %v2222 = vadd.f32 %v2220, %v2221
  %v2223 = vsel %vm95, %v1911, 0.0
  %v2224 = vrot.slane %v2223, 4
  %v2225 = vadd.f32 %v2223, %v2224
  %v2226 = vrot.slane %v2225, 2
  %v2227 = vadd.f32 %v2225, %v2226
  %v2228 = vrot.slane %v2227, 1
  %v2229 = vadd.f32 %v2227, %v2228
  %v2230 = vsel %vm95, %v1913, 0.0
  %v2231 = vrot.slane %v2230, 4
  %v2232 = vadd.f32 %v2230, %v2231
  %v2233 = vrot.slane %v2232, 2
  %v2234 = vadd.f32 %v2232, %v2233
  %v2235 = vrot.slane %v2234, 1
  %v2236 = vadd.f32 %v2234, %v2235
  %v2237 = vsel %vm95, %v1915, 0.0
  %v2238 = vrot.slane %v2237, 4
  %v2239 = vadd.f32 %v2237, %v2238
  %v2240 = vrot.slane %v2239, 2
  %v2241 = vadd.f32 %v2239, %v2240
  %v2242 = vrot.slane %v2241, 1
  %v2243 = vadd.f32 %v2241, %v2242
  %v2244 = vsel %vm95, %v1917, 0.0
  %v2245 = vrot.slane %v2244, 4
  %v2246 = vadd.f32 %v2244, %v2245
  %v2247 = vrot.slane %v2246, 2
  %v2248 = vadd.f32 %v2246, %v2247
  %v2249 = vrot.slane %v2248, 1
  %v2250 = vadd.f32 %v2248, %v2249
  %v2251 = vsel %vm95, %v1919, 0.0
  %v2252 = vrot.slane %v2251, 4
  %v2253 = vadd.f32 %v2251, %v2252
  %v2254 = vrot.slane %v2253, 2
  %v2255 = vadd.f32 %v2253, %v2254
  %v2256 = vrot.slane %v2255, 1
  %v2257 = vadd.f32 %v2255, %v2256
  %v2258 = vsel %vm95, %v1921, 0.0
  %v2259 = vrot.slane %v2258, 4
  %v2260 = vadd.f32 %v2258, %v2259
  %v2261 = vrot.slane %v2260, 2
  %v2262 = vadd.f32 %v2260, %v2261
  %v2263 = vrot.slane %v2262, 1
  %v2264 = vadd.f32 %v2262, %v2263
  %v2265 = vsel %vm95, %v1923, 0.0
  %v2266 = vrot.slane %v2265, 4
  %v2267 = vadd.f32 %v2265, %v2266
  %v2268 = vrot.slane %v2267, 2
  %v2269 = vadd.f32 %v2267, %v2268
  %v2270 = vrot.slane %v2269, 1
  %v2271 = vadd.f32 %v2269, %v2270
  %v2272 = vsel %vm95, %v1925, 0.0
  %v2273 = vrot.slane %v2272, 4
  %v2274 = vadd.f32 %v2272, %v2273
  %v2275 = vrot.slane %v2274, 2
  %v2276 = vadd.f32 %v2274, %v2275
  %v2277 = vrot.slane %v2276, 1
  %v2278 = vadd.f32 %v2276, %v2277
  %v2279 = vsel %vm95, %v1927, 0.0
  %v2280 = vrot.slane %v2279, 4
  %v2281 = vadd.f32 %v2279, %v2280
  %v2282 = vrot.slane %v2281, 2
  %v2283 = vadd.f32 %v2281, %v2282
  %v2284 = vrot.slane %v2283, 1
  %v2285 = vadd.f32 %v2283, %v2284
  %v2286 = vsel %vm95, %v1929, 0.0
  %v2287 = vrot.slane %v2286, 4
  %v2288 = vadd.f32 %v2286, %v2287
  %v2289 = vrot.slane %v2288, 2
  %v2290 = vadd.f32 %v2288, %v2289
  %v2291 = vrot.slane %v2290, 1
  %v2292 = vadd.f32 %v2290, %v2291
  %v2293 = vsel %vm95, %v1931, 0.0
  %v2294 = vrot.slane %v2293, 4
  %v2295 = vadd.f32 %v2293, %v2294
  %v2296 = vrot.slane %v2295, 2
  %v2297 = vadd.f32 %v2295, %v2296
  %v2298 = vrot.slane %v2297, 1
  %v2299 = vadd.f32 %v2297, %v2298
  %v2300 = vsel %vm95, %v1933, 0.0
  %v2301 = vrot.slane %v2300, 4
  %v2302 = vadd.f32 %v2300, %v2301
  %v2303 = vrot.slane %v2302, 2
  %v2304 = vadd.f32 %v2302, %v2303
  %v2305 = vrot.slane %v2304, 1
  %v2306 = vadd.f32 %v2304, %v2305
  %v2307 = vsel %vm95, %v1935, 0.0
  %v2308 = vrot.slane %v2307, 4
  %v2309 = vadd.f32 %v2307, %v2308
  %v2310 = vrot.slane %v2309, 2
  %v2311 = vadd.f32 %v2309, %v2310
  %v2312 = vrot.slane %v2311, 1
  %v2313 = vadd.f32 %v2311, %v2312
  %v2314 = vsel %vm95, %v1937, 0.0
  %v2315 = vrot.slane %v2314, 4
  %v2316 = vadd.f32 %v2314, %v2315
  %v2317 = vrot.slane %v2316, 2
  %v2318 = vadd.f32 %v2316, %v2317
  %v2319 = vrot.slane %v2318, 1
  %v2320 = vadd.f32 %v2318, %v2319
  %v2321 = vsel %vm95, %v1939, 0.0
  %v2322 = vrot.slane %v2321, 4
  %v2323 = vadd.f32 %v2321, %v2322
  %v2324 = vrot.slane %v2323, 2
  %v2325 = vadd.f32 %v2323, %v2324
  %v2326 = vrot.slane %v2325, 1
  %v2327 = vadd.f32 %v2325, %v2326
  %v2328 = vsel %vm95, %v1941, 0.0
  %v2329 = vrot.slane %v2328, 4
  %v2330 = vadd.f32 %v2328, %v2329
  %v2331 = vrot.slane %v2330, 2
  %v2332 = vadd.f32 %v2330, %v2331
  %v2333 = vrot.slane %v2332, 1
  %v2334 = vadd.f32 %v2332, %v2333
  %v2335 = vsel %vm95, %v1943, 0.0
  %v2336 = vrot.slane %v2335, 4
  %v2337 = vadd.f32 %v2335, %v2336
  %v2338 = vrot.slane %v2337, 2
  %v2339 = vadd.f32 %v2337, %v2338
  %v2340 = vrot.slane %v2339, 1
  %v2341 = vadd.f32 %v2339, %v2340
  %v2342 = vsel %vm95, %v1945, 0.0
  %v2343 = vrot.slane %v2342, 4
  %v2344 = vadd.f32 %v2342, %v2343
  %v2345 = vrot.slane %v2344, 2
  %v2346 = vadd.f32 %v2344, %v2345
  %v2347 = vrot.slane %v2346, 1
  %v2348 = vadd.f32 %v2346, %v2347
  %v2349 = vsel %vm95, %v1947, 0.0
  %v2350 = vrot.slane %v2349, 4
  %v2351 = vadd.f32 %v2349, %v2350
  %v2352 = vrot.slane %v2351, 2
  %v2353 = vadd.f32 %v2351, %v2352
  %v2354 = vrot.slane %v2353, 1
  %v2355 = vadd.f32 %v2353, %v2354
  %v2356 = vsel %vm95, %v1949, 0.0
  %v2357 = vrot.slane %v2356, 4
  %v2358 = vadd.f32 %v2356, %v2357
  %v2359 = vrot.slane %v2358, 2
  %v2360 = vadd.f32 %v2358, %v2359
  %v2361 = vrot.slane %v2360, 1
  %v2362 = vadd.f32 %v2360, %v2361
  %v2363 = vsel %vm95, %v1951, 0.0
  %v2364 = vrot.slane %v2363, 4
  %v2365 = vadd.f32 %v2363, %v2364
  %v2366 = vrot.slane %v2365, 2
  %v2367 = vadd.f32 %v2365, %v2366
  %v2368 = vrot.slane %v2367, 1
  %v2369 = vadd.f32 %v2367, %v2368
  %v2370 = vsel %vm95, %v1953, 0.0
  %v2371 = vrot.slane %v2370, 4
  %v2372 = vadd.f32 %v2370, %v2371
  %v2373 = vrot.slane %v2372, 2
  %v2374 = vadd.f32 %v2372, %v2373
  %v2375 = vrot.slane %v2374, 1
  %v2376 = vadd.f32 %v2374, %v2375
  %v2377 = vsel %vm95, %v1955, 0.0
  %v2378 = vrot.slane %v2377, 4
  %v2379 = vadd.f32 %v2377, %v2378
  %v2380 = vrot.slane %v2379, 2
  %v2381 = vadd.f32 %v2379, %v2380
  %v2382 = vrot.slane %v2381, 1
  %v2383 = vadd.f32 %v2381, %v2382
  %v2384 = vsel %vm95, %v1957, 0.0
  %v2385 = vrot.slane %v2384, 4
  %v2386 = vadd.f32 %v2384, %v2385
  %v2387 = vrot.slane %v2386, 2
  %v2388 = vadd.f32 %v2386, %v2387
  %v2389 = vrot.slane %v2388, 1
  %v2390 = vadd.f32 %v2388, %v2389
  %v2391 = vsel %vm95, %v1959, 0.0
  %v2392 = vrot.slane %v2391, 4
  %v2393 = vadd.f32 %v2391, %v2392
  %v2394 = vrot.slane %v2393, 2
  %v2395 = vadd.f32 %v2393, %v2394
  %v2396 = vrot.slane %v2395, 1
  %v2397 = vadd.f32 %v2395, %v2396
  %v2398 = vsel %vm95, %v1961, 0.0
  %v2399 = vrot.slane %v2398, 4
  %v2400 = vadd.f32 %v2398, %v2399
  %v2401 = vrot.slane %v2400, 2
  %v2402 = vadd.f32 %v2400, %v2401
  %v2403 = vrot.slane %v2402, 1
  %v2404 = vadd.f32 %v2402, %v2403
  %v2405 = vsel %vm95, %v1963, 0.0
  %v2406 = vrot.slane %v2405, 4
  %v2407 = vadd.f32 %v2405, %v2406
  %v2408 = vrot.slane %v2407, 2
  %v2409 = vadd.f32 %v2407, %v2408
  %v2410 = vrot.slane %v2409, 1
  %v2411 = vadd.f32 %v2409, %v2410
  %v2412 = vrcp.pop %v1970
  %v2413 = vrcp.pop %v1977
  %v2414 = vrcp.pop %v1984
  %v2415 = vrcp.pop %v1991
  %v2416 = vrcp.pop %v1998
  %v2417 = vrcp.pop %v2005
  %v2418 = vrcp.pop %v2012
  %v2419 = vrcp.pop %v2019
  %v2420 = vrcp.pop %v2026
  %v2421 = vrcp.pop %v2033
  %v2422 = vrcp.pop %v2040
  %v2423 = vrcp.pop %v2047
  %v2424 = vrcp.pop %v2054
  %v2425 = vrcp.pop %v2061
  %v2426 = vrcp.pop %v2068
  %v2427 = vrcp.pop %v2075
  %v2428 = vrcp.pop %v2082
  %v2429 = vrcp.pop %v2089
  %v2430 = vrcp.pop %v2096
  %v2431 = vrcp.pop %v2103
  %v2432 = vrcp.pop %v2110
  %v2433 = vrcp.pop %v2117
  %v2434 = vrcp.pop %v2124
  %v2435 = vrcp.pop %v2131
  %v2436 = vrcp.pop %v2138
  %v2437 = vrcp.pop %v2145
  %v2438 = vrcp.pop %v2152
  %v2439 = vrcp.pop %v2159
  %v2440 = vrcp.pop %v2166
  %v2441 = vrcp.pop %v2173
  %v2442 = vrcp.pop %v2180
  %v2443 = vrcp.pop %v2187
  %v2444 = vrcp.pop %v2194
  %v2445 = vrcp.pop %v2201
  %v2446 = vrcp.pop %v2208
  %v2447 = vrcp.pop %v2215
  %v2448 = vrcp.pop %v2222
  %v2449 = vrcp.pop %v2229
  %v2450 = vrcp.pop %v2236
  %v2451 = vrcp.pop %v2243
  %v2452 = vrcp.pop %v2250
  %v2453 = vrcp.pop %v2257
  %v2454 = vrcp.pop %v2264
  %v2455 = vrcp.pop %v2271
  %v2456 = vrcp.pop %v2278
  %v2457 = vrcp.pop %v2285
  %v2458 = vrcp.pop %v2292
  %v2459 = vrcp.pop %v2299
  %v2460 = vrcp.pop %v2306
  %v2461 = vrcp.pop %v2313
  %v2462 = vrcp.pop %v2320
  %v2463 = vrcp.pop %v2327
  %v2464 = vrcp.pop %v2334
  %v2465 = vrcp.pop %v2341
  %v2466 = vrcp.pop %v2348
  %v2467 = vrcp.pop %v2355
  %v2468 = vrcp.pop %v2362
  %v2469 = vrcp.pop %v2369
  %v2470 = vrcp.pop %v2376
  %v2471 = vrcp.pop %v2383
  %v2472 = vrcp.pop %v2390
  %v2473 = vrcp.pop %v2397
  %v2474 = vrcp.pop %v2404
  %v2475 = vrcp.pop %v2411
  %v2476 = vmul.f32 %v1837, %v2412
  %v2477 = vmul.f32 %v1839, %v2413
  %v2478 = vmul.f32 %v1841, %v2414
  %v2479 = vmul.f32 %v1843, %v2415
  %v2480 = vmul.f32 %v1845, %v2416
  %v2481 = vmul.f32 %v1847, %v2417
  %v2482 = vmul.f32 %v1849, %v2418
  %v2483 = vmul.f32 %v1851, %v2419
  %v2484 = vmul.f32 %v1853, %v2420
  %v2485 = vmul.f32 %v1855, %v2421
  %v2486 = vmul.f32 %v1857, %v2422
  %v2487 = vmul.f32 %v1859, %v2423
  %v2488 = vmul.f32 %v1861, %v2424
  %v2489 = vmul.f32 %v1863, %v2425
  %v2490 = vmul.f32 %v1865, %v2426
  %v2491 = vmul.f32 %v1867, %v2427
  %v2492 = vmul.f32 %v1869, %v2428
  %v2493 = vmul.f32 %v1871, %v2429
  %v2494 = vmul.f32 %v1873, %v2430
  %v2495 = vmul.f32 %v1875, %v2431
  %v2496 = vmul.f32 %v1877, %v2432
  %v2497 = vmul.f32 %v1879, %v2433
  %v2498 = vmul.f32 %v1881, %v2434
  %v2499 = vmul.f32 %v1883, %v2435
  %v2500 = vmul.f32 %v1885, %v2436
  %v2501 = vmul.f32 %v1887, %v2437
  %v2502 = vmul.f32 %v1889, %v2438
  %v2503 = vmul.f32 %v1891, %v2439
  %v2504 = vmul.f32 %v1893, %v2440
  %v2505 = vmul.f32 %v1895, %v2441
  %v2506 = vmul.f32 %v1897, %v2442
  %v2507 = vmul.f32 %v1899, %v2443
  %v2508 = vmul.f32 %v1901, %v2444
  %v2509 = vmul.f32 %v1903, %v2445
  %v2510 = vmul.f32 %v1905, %v2446
  %v2511 = vmul.f32 %v1907, %v2447
  %v2512 = vmul.f32 %v1909, %v2448
  %v2513 = vmul.f32 %v1911, %v2449
  %v2514 = vmul.f32 %v1913, %v2450
  %v2515 = vmul.f32 %v1915, %v2451
  %v2516 = vmul.f32 %v1917, %v2452
  %v2517 = vmul.f32 %v1919, %v2453
  %v2518 = vmul.f32 %v1921, %v2454
  %v2519 = vmul.f32 %v1923, %v2455
  %v2520 = vmul.f32 %v1925, %v2456
  %v2521 = vmul.f32 %v1927, %v2457
  %v2522 = vmul.f32 %v1929, %v2458
  %v2523 = vmul.f32 %v1931, %v2459
  %v2524 = vmul.f32 %v1933, %v2460
  %v2525 = vmul.f32 %v1935, %v2461
  %v2526 = vmul.f32 %v1937, %v2462
  %v2527 = vmul.f32 %v1939, %v2463
  %v2528 = vmul.f32 %v1941, %v2464
  %v2529 = vmul.f32 %v1943, %v2465
  %v2530 = vmul.f32 %v1945, %v2466
  %v2531 = vmul.f32 %v1947, %v2467
  %v2532 = vmul.f32 %v1949, %v2468
  %v2533 = vmul.f32 %v1951, %v2469
  %v2534 = vmul.f32 %v1953, %v2470
  %v2535 = vmul.f32 %v1955, %v2471
  %v2536 = vmul.f32 %v1957, %v2472
  %v2537 = vmul.f32 %v1959, %v2473
  %v2538 = vmul.f32 %v1961, %v2474
  %v2539 = vmul.f32 %v1963, %v2475
  %v2540 = vmul.f32 %v20, %v2476
  %v2541 = vmul.f32 %v21, %v2477
  %v2542 = vmul.f32 %v22, %v2478
  %v2543 = vmul.f32 %v23, %v2479
  %v2544 = vmul.f32 %v24, %v2480
  %v2545 = vmul.f32 %v25, %v2481
  %v2546 = vmul.f32 %v26, %v2482
  %v2547 = vmul.f32 %v27, %v2483
  %v2548 = vmul.f32 %v28, %v2484
  %v2549 = vmul.f32 %v29, %v2485
  %v2550 = vmul.f32 %v30, %v2486
  %v2551 = vmul.f32 %v31, %v2487
  %v2552 = vmul.f32 %v32, %v2488
  %v2553 = vmul.f32 %v33, %v2489
  %v2554 = vmul.f32 %v34, %v2490
  %v2555 = vmul.f32 %v35, %v2491
  %v2556 = vmul.f32 %v36, %v2492
  %v2557 = vmul.f32 %v37, %v2493
  %v2558 = vmul.f32 %v38, %v2494
  %v2559 = vmul.f32 %v39, %v2495
  %v2560 = vmul.f32 %v40, %v2496
  %v2561 = vmul.f32 %v41, %v2497
  %v2562 = vmul.f32 %v42, %v2498
  %v2563 = vmul.f32 %v43, %v2499
  %v2564 = vmul.f32 %v44, %v2500
  %v2565 = vmul.f32 %v45, %v2501
  %v2566 = vmul.f32 %v46, %v2502
  %v2567 = vmul.f32 %v47, %v2503
  %v2568 = vmul.f32 %v48, %v2504
  %v2569 = vmul.f32 %v49, %v2505
  %v2570 = vmul.f32 %v50, %v2506
  %v2571 = vmul.f32 %v51, %v2507
  %v2572 = vmul.f32 %v52, %v2508
  %v2573 = vmul.f32 %v53, %v2509
  %v2574 = vmul.f32 %v54, %v2510
  %v2575 = vmul.f32 %v55, %v2511
  %v2576 = vmul.f32 %v56, %v2512
  %v2577 = vmul.f32 %v57, %v2513
  %v2578 = vmul.f32 %v58, %v2514
  %v2579 = vmul.f32 %v59, %v2515
  %v2580 = vmul.f32 %v60, %v2516
  %v2581 = vmul.f32 %v61, %v2517
  %v2582 = vmul.f32 %v62, %v2518
  %v2583 = vmul.f32 %v63, %v2519
  %v2584 = vmul.f32 %v64, %v2520
  %v2585 = vmul.f32 %v65, %v2521
  %v2586 = vmul.f32 %v66, %v2522
  %v2587 = vmul.f32 %v67, %v2523
  %v2588 = vmul.f32 %v68, %v2524
  %v2589 = vmul.f32 %v69, %v2525
  %v2590 = vmul.f32 %v70, %v2526
  %v2591 = vmul.f32 %v71, %v2527
  %v2592 = vmul.f32 %v72, %v2528
  %v2593 = vmul.f32 %v73, %v2529
  %v2594 = vmul.f32 %v74, %v2530
  %v2595 = vmul.f32 %v75, %v2531
  %v2596 = vmul.f32 %v76, %v2532
  %v2597 = vmul.f32 %v77, %v2533
  %v2598 = vmul.f32 %v78, %v2534
  %v2599 = vmul.f32 %v79, %v2535
  %v2600 = vmul.f32 %v80, %v2536
  %v2601 = vmul.f32 %v81, %v2537
  %v2602 = vmul.f32 %v82, %v2538
  %v2603 = vmul.f32 %v83, %v2539
  %2604 = vst.msk [vmem:[%s5] sm:$0xff] %vm95, %v2540
  %2605 = vst.msk [vmem:[%s5 + $0x8] sm:$0xff] %vm95, %v2541
  %2606 = vst.msk [vmem:[%s5 + $0x10] sm:$0xff] %vm95, %v2542
  %2607 = vst.msk [vmem:[%s5 + $0x18] sm:$0xff] %vm95, %v2543
  %2608 = vst.msk [vmem:[%s5 + $0x20] sm:$0xff] %vm95, %v2544
  %2609 = vst.msk [vmem:[%s5 + $0x28] sm:$0xff] %vm95, %v2545
  %2610 = vst.msk [vmem:[%s5 + $0x30] sm:$0xff] %vm95, %v2546
  %2611 = vst.msk [vmem:[%s5 + $0x38] sm:$0xff] %vm95, %v2547
  %2612 = vst.msk [vmem:[%s5 + $0x40] sm:$0xff] %vm95, %v2548
  %2613 = vst.msk [vmem:[%s5 + $0x48] sm:$0xff] %vm95, %v2549
  %2614 = vst.msk [vmem:[%s5 + $0x50] sm:$0xff] %vm95, %v2550
  %2615 = vst.msk [vmem:[%s5 + $0x58] sm:$0xff] %vm95, %v2551
  %2616 = vst.msk [vmem:[%s5 + $0x60] sm:$0xff] %vm95, %v2552
  %2617 = vst.msk [vmem:[%s5 + $0x68] sm:$0xff] %vm95, %v2553
  %2618 = vst.msk [vmem:[%s5 + $0x70] sm:$0xff] %vm95, %v2554
  %2619 = vst.msk [vmem:[%s5 + $0x78] sm:$0xff] %vm95, %v2555
  %2620 = vst.msk [vmem:[%s5 + $0x80] sm:$0xff] %vm95, %v2556
  %2621 = vst.msk [vmem:[%s5 + $0x88] sm:$0xff] %vm95, %v2557
  %2622 = vst.msk [vmem:[%s5 + $0x90] sm:$0xff] %vm95, %v2558
  %2623 = vst.msk [vmem:[%s5 + $0x98] sm:$0xff] %vm95, %v2559
  %2624 = vst.msk [vmem:[%s5 + $0xa0] sm:$0xff] %vm95, %v2560
  %2625 = vst.msk [vmem:[%s5 + $0xa8] sm:$0xff] %vm95, %v2561
  %2626 = vst.msk [vmem:[%s5 + $0xb0] sm:$0xff] %vm95, %v2562
  %2627 = vst.msk [vmem:[%s5 + $0xb8] sm:$0xff] %vm95, %v2563
  %2628 = vst.msk [vmem:[%s5 + $0xc0] sm:$0xff] %vm95, %v2564
  %2629 = vst.msk [vmem:[%s5 + $0xc8] sm:$0xff] %vm95, %v2565
  %2630 = vst.msk [vmem:[%s5 + $0xd0] sm:$0xff] %vm95, %v2566
  %2631 = vst.msk [vmem:[%s5 + $0xd8] sm:$0xff] %vm95, %v2567
  %2632 = vst.msk [vmem:[%s5 + $0xe0] sm:$0xff] %vm95, %v2568
  %2633 = vst.msk [vmem:[%s5 + $0xe8] sm:$0xff] %vm95, %v2569
  %2634 = vst.msk [vmem:[%s5 + $0xf0] sm:$0xff] %vm95, %v2570
  %2635 = vst.msk [vmem:[%s5 + $0xf8] sm:$0xff] %vm95, %v2571
  %2636 = vst.msk [vmem:[%s5 + $0x100] sm:$0xff] %vm95, %v2572
  %2637 = vst.msk [vmem:[%s5 + $0x108] sm:$0xff] %vm95, %v2573
  %2638 = vst.msk [vmem:[%s5 + $0x110] sm:$0xff] %vm95, %v2574
  %2639 = vst.msk [vmem:[%s5 + $0x118] sm:$0xff] %vm95, %v2575
  %2640 = vst.msk [vmem:[%s5 + $0x120] sm:$0xff] %vm95, %v2576
  %2641 = vst.msk [vmem:[%s5 + $0x128] sm:$0xff] %vm95, %v2577
  %2642 = vst.msk [vmem:[%s5 + $0x130] sm:$0xff] %vm95, %v2578
  %2643 = vst.msk [vmem:[%s5 + $0x138] sm:$0xff] %vm95, %v2579
  %2644 = vst.msk [vmem:[%s5 + $0x140] sm:$0xff] %vm95, %v2580
  %2645 = vst.msk [vmem:[%s5 + $0x148] sm:$0xff] %vm95, %v2581
  %2646 = vst.msk [vmem:[%s5 + $0x150] sm:$0xff] %vm95, %v2582
  %2647 = vst.msk [vmem:[%s5 + $0x158] sm:$0xff] %vm95, %v2583
  %2648 = vst.msk [vmem:[%s5 + $0x160] sm:$0xff] %vm95, %v2584
  %2649 = vst.msk [vmem:[%s5 + $0x168] sm:$0xff] %vm95, %v2585
  %2650 = vst.msk [vmem:[%s5 + $0x170] sm:$0xff] %vm95, %v2586
  %2651 = vst.msk [vmem:[%s5 + $0x178] sm:$0xff] %vm95, %v2587
  %2652 = vst.msk [vmem:[%s5 + $0x180] sm:$0xff] %vm95, %v2588
  %2653 = vst.msk [vmem:[%s5 + $0x188] sm:$0xff] %vm95, %v2589
  %2654 = vst.msk [vmem:[%s5 + $0x190] sm:$0xff] %vm95, %v2590
  %2655 = vst.msk [vmem:[%s5 + $0x198] sm:$0xff] %vm95, %v2591
  %2656 = vst.msk [vmem:[%s5 + $0x1a0] sm:$0xff] %vm95, %v2592
  %2657 = vst.msk [vmem:[%s5 + $0x1a8] sm:$0xff] %vm95, %v2593
  %2658 = vst.msk [vmem:[%s5 + $0x1b0] sm:$0xff] %vm95, %v2594
  %2659 = vst.msk [vmem:[%s5 + $0x1b8] sm:$0xff] %vm95, %v2595
  %2660 = vst.msk [vmem:[%s5 + $0x1c0] sm:$0xff] %vm95, %v2596
  %2661 = vst.msk [vmem:[%s5 + $0x1c8] sm:$0xff] %vm95, %v2597
  %2662 = vst.msk [vmem:[%s5 + $0x1d0] sm:$0xff] %vm95, %v2598
  %2663 = vst.msk [vmem:[%s5 + $0x1d8] sm:$0xff] %vm95, %v2599
  %2664 = vst.msk [vmem:[%s5 + $0x1e0] sm:$0xff] %vm95, %v2600
  %2665 = vst.msk [vmem:[%s5 + $0x1e8] sm:$0xff] %vm95, %v2601
  %2666 = vst.msk [vmem:[%s5 + $0x1f0] sm:$0xff] %vm95, %v2602
  %2667 = vst.msk [vmem:[%s5 + $0x1f8] sm:$0xff] %vm95, %v2603
  // Predicated region
  $region22: #{tpu_custom_call.1} parent=0 // pred_check
    _
  $region23: #{tpu_custom_call.1} parent=0 // pred_check_branch
    %2669 = sbr.rel (0) target = $region25
  $region24: #{tpu_custom_call.1} parent=0 // pred_region
    _
  $region25: #{tpu_custom_call.1} parent=0 // pred_fallthru
    _
  // Predicated region
  $region26: #{tpu_custom_call.1} parent=0 // pred_check
    _
  $region27: #{tpu_custom_call.1} parent=0 // pred_check_branch
    %2671 = sbr.rel (0) target = $region29
  $region28: #{tpu_custom_call.1} parent=0 // pred_region
    _
  $region29: #{tpu_custom_call.1} parent=0 // pred_fallthru
    _

</llo_original>
